<compile_context>
chip_gen: v7x
topology: tpu7x:2x2x1
jax: 0.10.0
libtpu: 0.0.40
codegen_flags: <defaults>
</compile_context>

<pallas_src>
import jax
import jax.numpy as jnp
import numpy as np
from jax import lax
from jax.experimental import pallas as pl
from jax.experimental.pallas import tpu as pltpu

# Small, module-consistent shapes
B, T = 2, 8          # batch, sequence length
VOCAB = 50           # vocab size
VOCAB_P = 64         # vocab padded to a multiple of 8 sublanes
E = 32               # embedding size
H = 32               # hidden size  -> enc_dim = 2*H = 64 (bidirectional)
PAD = 1              # padding_idx
BP = 8               # batch padded to 8 sublanes (full-width vreg rows)


# -----------------------------------------------------------------------------
# Pallas kernel
# -----------------------------------------------------------------------------
def bilstm_encoder_kernel(ids_ref, len_ref, w_ref, whh_f_ref, whh_b_ref, b_ref,
                          out_ref):
    # ids_ref:   [T*BP, 1]    int32, time-major (row t*BP + b = token x[b, t])
    # len_ref:   [BP, 1]      int32 sequence lengths (0 for batch-pad rows)
    # w_ref:     [VOCAB_P,8H] bf16  folded embed@wih, cols [fwd i,f,g,o | bwd i,f,g,o]
    # whh_f_ref: [H, 4H]      bf16 forward  recurrent weights (i,f,g,o)
    # whh_b_ref: [H, 4H]      bf16 backward recurrent weights (i,f,g,o)
    # b_ref:     [1, 8H]      f32 gate bias, same column layout as w_ref
    # out_ref:   [BP, 2H]     f32 final hidden states [h_fwd | h_bwd]
    n = ids_ref.shape[0]
    n_b = len_ref.shape[0]
    n_t = n // n_b
    vp, g8 = w_ref.shape
    gh = g8 // 2                      # 4H (per-direction gate width)
    hh = gh // 4                      # H

    # ---- hoisted prologue (off the recurrent chain) --------------------------
    # Embedding gather + input projection for BOTH directions as one bf16 MXU call
    # (one-hot rows are exact; accumulation in f32).
    ids = ids_ref[...]                                                  # [N, 1]
    onehot = (lax.broadcasted_iota(jnp.int32, (n, vp), 1) == ids)
    ih = jnp.dot(onehot.astype(jnp.bfloat16), w_ref[...],
                 preferred_element_type=jnp.float32) + b_ref[...]       # [N, 8H] f32

    whh_f = whh_f_ref[...]                                              # [H, 4H] bf16
    whh_b = whh_b_ref[...]
    lens = len_ref[...]                                                 # [BP, 1]

    # Lane constants for the fused gate activation:
    #   sigmoid(x) = 0.5 * tanh(0.5 * x) + 0.5   and   tanh(x) = 1.0 * tanh(1.0 * x) + 0.0
    # so ONE tanh per direction per step covers all four gates.
    lane = lax.broadcasted_iota(jnp.int32, (n_b, gh), 1)
    g_lanes = (lane >= 2 * hh) & (lane < 3 * hh)                        # the 'g' gate block
    scale = jnp.where(g_lanes, 1.0, 0.5).astype(jnp.float32)            # pre & post scale
    shift = jnp.where(g_lanes, 0.0, 0.5).astype(jnp.float32)            # post offset

    # Packed-sequence keep masks (state frozen on padding), hoisted off the chain.
    keep = [jnp.broadcast_to(lens > t, (n_b, hh)) for t in range(n_t)]

    def lstm_step(h, c, ih_t, whh, keep_t):
        gates = ih_t + jnp.dot(h.astype(jnp.bfloat16), whh,
                               preferred_element_type=jnp.float32)      # [BP, 4H] f32
        th = jnp.tanh(gates * scale)
        act = th * scale + shift               # [sig(i) | sig(f) | tanh(g) | sig(o)]
        i_g = act[:, 0 * hh:1 * hh]
        f_g = act[:, 1 * hh:2 * hh]
        g_g = act[:, 2 * hh:3 * hh]
        o_g = act[:, 3 * hh:4 * hh]
        c_new = f_g * c + i_g * g_g
        h_new = o_g * jnp.tanh(c_new)
        return jnp.where(keep_t, h_new, h), jnp.where(keep_t, c_new, c)

    z = jnp.zeros((n_b, hh), jnp.float32)
    h_f, c_f, h_b, c_b = z, z, z, z
    # Fully unrolled T-step recurrence. The fwd/bwd chains are data-independent, so
    # the scheduler interleaves their MXU / EUP / VPU work within the basic block.
    for t in range(n_t):
        tb = n_t - 1 - t
        h_f, c_f = lstm_step(h_f, c_f, ih[t * n_b:(t + 1) * n_b, :gh], whh_f, keep[t])
        h_b, c_b = lstm_step(h_b, c_b, ih[tb * n_b:(tb + 1) * n_b, gh:], whh_b, keep[tb])

    out_ref[...] = jnp.concatenate([h_f, h_b], axis=1)     # [BP, 2H] = [h_fwd | h_bwd]


def _full_spec(shape):
    nd = len(shape)
    return pl.BlockSpec(shape, lambda i, _nd=nd: (0,) * _nd)


def bilstm_final(ids, len_p, w_cat, whh_f, whh_b, b_cat):
    n_b = len_p.shape[0]
    gh = whh_f.shape[1]                                     # 4H
    operands = (ids, len_p, w_cat, whh_f, whh_b, b_cat)
    return pl.pallas_call(
        bilstm_encoder_kernel,
        out_shape=jax.ShapeDtypeStruct((n_b, gh // 2), jnp.float32),
        grid=(1,),
        in_specs=[_full_spec(a.shape) for a in operands],
        out_specs=_full_spec((n_b, gh // 2)),
        compiler_params=pltpu.CompilerParams(dimension_semantics=("arbitrary",)),
    )(*operands)


# -----------------------------------------------------------------------------
# Offline parameter re-layout (done ONCE, not per forward call)
# -----------------------------------------------------------------------------
def prepare_kernel_params(params):
    """Fold the embedding into the input projection and cast MXU operands to bf16."""
    embed_p = jnp.zeros((VOCAB_P, E), jnp.float32).at[:VOCAB].set(params["embed"])
    hi = jax.lax.Precision.HIGHEST
    w_f = jnp.dot(embed_p, params["wih_f"], precision=hi)               # [VOCAB_P, 4H]
    w_b = jnp.dot(embed_p, params["wih_b"], precision=hi)
    w_cat = jnp.concatenate([w_f, w_b], axis=1).astype(jnp.bfloat16)    # [VOCAB_P, 8H]
    whh_f = params["whh_f"].astype(jnp.bfloat16)                        # [H, 4H]
    whh_b = params["whh_b"].astype(jnp.bfloat16)
    b_cat = jnp.concatenate([params["b_f"], params["b_b"]], axis=1)     # [1, 8H] f32
    return w_cat, whh_f, whh_b, b_cat


# -----------------------------------------------------------------------------
# Encoder.forward wrapper (weight re-layout hoisted out of the call path)
# -----------------------------------------------------------------------------
def make_encoder(params):
    prepared = prepare_kernel_params(params)    # cached; reused by every forward

    @jax.jit
    def forward(x):
        """x: [B, T] int32 token ids. Returns final: [B, 2H] float32."""
        bsz, n_t = x.shape
        mask = x != PAD
        lengths = jnp.sum(mask.astype(jnp.int32), axis=1)               # [B]
        # embed_dropout: identity in eval mode
        # pad batch to 8 sublanes; pad rows use PAD tokens and length 0
        x_p = jnp.full((BP, n_t), PAD, jnp.int32).at[:bsz, :].set(x.astype(jnp.int32))
        len_p = jnp.zeros((BP, 1), jnp.int32).at[:bsz, 0].set(lengths)
        ids = jnp.transpose(x_p, (1, 0)).reshape(n_t * BP, 1)           # time-major
        final_p = bilstm_final(ids, len_p, *prepared)
        return final_p[:bsz]

    return forward


# -----------------------------------------------------------------------------
# Pure-JAX reference (lax.scan) for correctness check
# -----------------------------------------------------------------------------
def _ref_dir(emb, mask, wih, whh, b, reverse):
    zeros = jnp.zeros((emb.shape[0], H), jnp.float32)

    def step(carry, xm):
        h, c = carry
        x_t, m_t = xm
        gates = (jnp.dot(x_t, wih, precision=jax.lax.Precision.HIGHEST)
                 + jnp.dot(h, whh, precision=jax.lax.Precision.HIGHEST) + b)
        i = jax.nn.sigmoid(gates[:, 0 * H:1 * H])
        f = jax.nn.sigmoid(gates[:, 1 * H:2 * H])
        g = jnp.tanh(gates[:, 2 * H:3 * H])
        o = jax.nn.sigmoid(gates[:, 3 * H:4 * H])
        c_new = f * c + i * g
        h_new = o * jnp.tanh(c_new)
        keep = m_t[:, None]
        return (jnp.where(keep, h_new, h), jnp.where(keep, c_new, c)), None

    xs = (jnp.swapaxes(emb, 0, 1), jnp.swapaxes(mask, 0, 1))
    (h, _), _ = lax.scan(step, (zeros, zeros), xs, reverse=reverse)
    return h


def encoder_forward_ref(x, params):
    mask = (x != PAD)
    emb = params["embed"][x].astype(jnp.float32)
    h_f = _ref_dir(emb, mask, params["wih_f"], params["whh_f"], params["b_f"], False)
    h_b = _ref_dir(emb, mask, params["wih_b"], params["whh_b"], params["b_b"], True)
    return jnp.concatenate([h_f, h_b], axis=-1)


# -----------------------------------------------------------------------------
# Deterministic parameter init
# -----------------------------------------------------------------------------
def init_params(key):
    ks = jax.random.split(key, 7)
    k = 1.0 / np.sqrt(H)
    embed = 0.1 * jax.random.normal(ks[0], (VOCAB, E), jnp.float32)
    embed = embed.at[PAD].set(0.0)                  # padding_idx row = 0
    u = lambda kk, shape: jax.random.uniform(kk, shape, jnp.float32, -k, k)
    return dict(
        embed=embed,
        wih_f=u(ks[1], (E, 4 * H)), whh_f=u(ks[2], (H, 4 * H)),
        b_f=u(ks[3], (1, 4 * H)),
        wih_b=u(ks[4], (E, 4 * H)), whh_b=u(ks[5], (H, 4 * H)),
        b_b=u(ks[6], (1, 4 * H)),
    )


if __name__ == "__main__":
    key = jax.random.PRNGKey(0)
    pkey, xkey = jax.random.split(key)
    params = init_params(pkey)

    # Build token ids [B, T], padded with id 1 (PAD); non-pad tokens in [2, VOCAB)
    tokens = jax.random.randint(xkey, (B, T), 2, VOCAB, dtype=jnp.int32)
    lengths = jnp.array([T, 5], dtype=jnp.int32)
    pos = jnp.arange(T, dtype=jnp.int32)[None, :]
    x = jnp.where(pos < lengths[:, None], tokens, PAD)

    encoder_forward = make_encoder(params)
    final = jax.block_until_ready(encoder_forward(x))
    assert final.shape == (B, 2 * H)

    ref = jax.block_until_ready(encoder_forward_ref(x, params))
    # bf16 MXU operands (f32 accumulation / f32 state) -> slightly looser tolerance
    # than the pure-f32 HIGHEST-precision reference.
    np.testing.assert_allclose(np.asarray(final), np.asarray(ref),
                               atol=5e-3, rtol=5e-3)
    print("KERNEL_OK")
</pallas_src>

<mosaic_0001>
module attributes {stable_mosaic.version = 11 : i64} {
  func.func @bilstm_encoder_kernel(%arg0: i32, %arg1: memref<64x1xi32, #tpu.memory_space<vmem>>, %arg2: memref<8x1xi32, #tpu.memory_space<vmem>>, %arg3: memref<64x256xbf16, #tpu.memory_space<vmem>>, %arg4: memref<32x128xbf16, #tpu.memory_space<vmem>>, %arg5: memref<32x128xbf16, #tpu.memory_space<vmem>>, %arg6: memref<1x256xf32, #tpu.memory_space<vmem>>, %arg7: memref<8x64xf32, #tpu.memory_space<vmem>>) attributes {dimension_semantics = [#tpu.dimension_semantics<arbitrary>], iteration_bounds = array<i64: 1>, scalar_prefetch = 0 : i64, scratch_operands = 0 : i64, tpu.core_type = #tpu.core_type<tc>, window_params = [{pipeline_mode = #tpu.pipeline_mode<synchronous>, transform_indices = @transform_0, window_bounds = array<i64: 64, 1>}, {pipeline_mode = #tpu.pipeline_mode<synchronous>, transform_indices = @transform_1, window_bounds = array<i64: 8, 1>}, {pipeline_mode = #tpu.pipeline_mode<synchronous>, transform_indices = @transform_2, window_bounds = array<i64: 64, 256>}, {pipeline_mode = #tpu.pipeline_mode<synchronous>, transform_indices = @transform_3, window_bounds = array<i64: 32, 128>}, {pipeline_mode = #tpu.pipeline_mode<synchronous>, transform_indices = @transform_4, window_bounds = array<i64: 32, 128>}, {pipeline_mode = #tpu.pipeline_mode<synchronous>, transform_indices = @transform_5, window_bounds = array<i64: 1, 256>}, {pipeline_mode = #tpu.pipeline_mode<synchronous>, transform_indices = @transform_6, window_bounds = array<i64: 8, 64>}]} {
    %c0 = arith.constant 0 : index
    %c0_0 = arith.constant 0 : index
    %0 = vector.load %arg1[%c0, %c0_0] : memref<64x1xi32, #tpu.memory_space<vmem>>, vector<64x1xi32>
    %1 = tpu.iota {dimensions = array<i32: 1>} : vector<64x64xi32>
    %2 = vector.broadcast %0 : vector<64x1xi32> to vector<64x64xi32>
    %3 = arith.cmpi eq, %1, %2 : vector<64x64xi32>
    %4 = arith.extui %3 : vector<64x64xi1> to vector<64x64xi32>
    %5 = arith.sitofp %4 : vector<64x64xi32> to vector<64x64xf32>
    %6 = arith.truncf %5 : vector<64x64xf32> to vector<64x64xbf16>
    %c0_1 = arith.constant 0 : index
    %c0_2 = arith.constant 0 : index
    %7 = vector.load %arg3[%c0_1, %c0_2] : memref<64x256xbf16, #tpu.memory_space<vmem>>, vector<64x256xbf16>
    %cst = arith.constant dense<0.000000e+00> : vector<64x256xf32>
    %8 = tpu.matmul %6, %7, %cst {dimension_numbers = #tpu.dot_dimension_numbers<[1], [0], [0], [1], [0, 0, 1, 1], [], []>} : vector<64x64xbf16>, vector<64x256xbf16>, vector<64x256xf32> -> vector<64x256xf32>
    %c0_3 = arith.constant 0 : index
    %c0_4 = arith.constant 0 : index
    %9 = vector.load %arg6[%c0_3, %c0_4] : memref<1x256xf32, #tpu.memory_space<vmem>>, vector<1x256xf32>
    %10 = vector.broadcast %9 : vector<1x256xf32> to vector<64x256xf32>
    %11 = arith.addf %8, %10 : vector<64x256xf32>
    %c0_5 = arith.constant 0 : index
    %c0_6 = arith.constant 0 : index
    %12 = vector.load %arg4[%c0_5, %c0_6] : memref<32x128xbf16, #tpu.memory_space<vmem>>, vector<32x128xbf16>
    %c0_7 = arith.constant 0 : index
    %c0_8 = arith.constant 0 : index
    %13 = vector.load %arg5[%c0_7, %c0_8] : memref<32x128xbf16, #tpu.memory_space<vmem>>, vector<32x128xbf16>
    %c0_9 = arith.constant 0 : index
    %c0_10 = arith.constant 0 : index
    %14 = vector.load %arg2[%c0_9, %c0_10] : memref<8x1xi32, #tpu.memory_space<vmem>>, vector<8x1xi32>
    %15 = tpu.iota {dimensions = array<i32: 1>} : vector<8x128xi32>
    %c64_i32 = arith.constant 64 : i32
    %16 = vector.broadcast %c64_i32 : i32 to vector<8x128xi32>
    %17 = arith.cmpi sge, %15, %16 : vector<8x128xi32>
    %c96_i32 = arith.constant 96 : i32
    %18 = vector.broadcast %c96_i32 : i32 to vector<8x128xi32>
    %19 = arith.cmpi slt, %15, %18 : vector<8x128xi32>
    %20 = arith.andi %17, %19 : vector<8x128xi1>
    %cst_11 = arith.constant 1.000000e+00 : f32
    %cst_12 = arith.constant 5.000000e-01 : f32
    %21 = vector.broadcast %cst_11 : f32 to vector<8x128xf32>
    %22 = vector.broadcast %cst_12 : f32 to vector<8x128xf32>
    %23 = arith.select %20, %21, %22 : vector<8x128xi1>, vector<8x128xf32>
    %cst_13 = arith.constant 0.000000e+00 : f32
    %cst_14 = arith.constant 5.000000e-01 : f32
    %24 = vector.broadcast %cst_13 : f32 to vector<8x128xf32>
    %25 = vector.broadcast %cst_14 : f32 to vector<8x128xf32>
    %26 = arith.select %20, %24, %25 : vector<8x128xi1>, vector<8x128xf32>
    %c0_i32 = arith.constant 0 : i32
    %27 = vector.broadcast %c0_i32 : i32 to vector<8x1xi32>
    %28 = arith.cmpi sgt, %14, %27 : vector<8x1xi32>
    %29 = vector.shape_cast %28 : vector<8x1xi1> to vector<8x1xi1>
    %30 = vector.broadcast %29 : vector<8x1xi1> to vector<8x32xi1>
    %c1_i32 = arith.constant 1 : i32
    %31 = vector.broadcast %c1_i32 : i32 to vector<8x1xi32>
    %32 = arith.cmpi sgt, %14, %31 : vector<8x1xi32>
    %33 = vector.shape_cast %32 : vector<8x1xi1> to vector<8x1xi1>
    %34 = vector.broadcast %33 : vector<8x1xi1> to vector<8x32xi1>
    %c2_i32 = arith.constant 2 : i32
    %35 = vector.broadcast %c2_i32 : i32 to vector<8x1xi32>
    %36 = arith.cmpi sgt, %14, %35 : vector<8x1xi32>
    %37 = vector.shape_cast %36 : vector<8x1xi1> to vector<8x1xi1>
    %38 = vector.broadcast %37 : vector<8x1xi1> to vector<8x32xi1>
    %c3_i32 = arith.constant 3 : i32
    %39 = vector.broadcast %c3_i32 : i32 to vector<8x1xi32>
    %40 = arith.cmpi sgt, %14, %39 : vector<8x1xi32>
    %41 = vector.shape_cast %40 : vector<8x1xi1> to vector<8x1xi1>
    %42 = vector.broadcast %41 : vector<8x1xi1> to vector<8x32xi1>
    %c4_i32 = arith.constant 4 : i32
    %43 = vector.broadcast %c4_i32 : i32 to vector<8x1xi32>
    %44 = arith.cmpi sgt, %14, %43 : vector<8x1xi32>
    %45 = vector.shape_cast %44 : vector<8x1xi1> to vector<8x1xi1>
    %46 = vector.broadcast %45 : vector<8x1xi1> to vector<8x32xi1>
    %c5_i32 = arith.constant 5 : i32
    %47 = vector.broadcast %c5_i32 : i32 to vector<8x1xi32>
    %48 = arith.cmpi sgt, %14, %47 : vector<8x1xi32>
    %49 = vector.shape_cast %48 : vector<8x1xi1> to vector<8x1xi1>
    %50 = vector.broadcast %49 : vector<8x1xi1> to vector<8x32xi1>
    %c6_i32 = arith.constant 6 : i32
    %51 = vector.broadcast %c6_i32 : i32 to vector<8x1xi32>
    %52 = arith.cmpi sgt, %14, %51 : vector<8x1xi32>
    %53 = vector.shape_cast %52 : vector<8x1xi1> to vector<8x1xi1>
    %54 = vector.broadcast %53 : vector<8x1xi1> to vector<8x32xi1>
    %c7_i32 = arith.constant 7 : i32
    %55 = vector.broadcast %c7_i32 : i32 to vector<8x1xi32>
    %56 = arith.cmpi sgt, %14, %55 : vector<8x1xi32>
    %57 = vector.shape_cast %56 : vector<8x1xi1> to vector<8x1xi1>
    %58 = vector.broadcast %57 : vector<8x1xi1> to vector<8x32xi1>
    %cst_15 = arith.constant 0.000000e+00 : f32
    %59 = vector.broadcast %cst_15 : f32 to vector<8x32xf32>
    %60 = vector.extract_strided_slice %11 {offsets = [0, 0], sizes = [8, 128], strides = [1, 1]} : vector<64x256xf32> to vector<8x128xf32>
    %61 = arith.truncf %59 : vector<8x32xf32> to vector<8x32xbf16>
    %cst_16 = arith.constant dense<0.000000e+00> : vector<8x128xf32>
    %62 = tpu.matmul %61, %12, %cst_16 {dimension_numbers = #tpu.dot_dimension_numbers<[1], [0], [0], [1], [0, 0, 1, 1], [], []>} : vector<8x32xbf16>, vector<32x128xbf16>, vector<8x128xf32> -> vector<8x128xf32>
    %63 = arith.addf %60, %62 : vector<8x128xf32>
    %64 = arith.mulf %63, %23 : vector<8x128xf32>
    %65 = math.tanh %64 : vector<8x128xf32>
    %66 = arith.mulf %65, %23 : vector<8x128xf32>
    %67 = arith.addf %66, %26 : vector<8x128xf32>
    %68 = vector.extract_strided_slice %67 {offsets = [0, 0], sizes = [8, 32], strides = [1, 1]} : vector<8x128xf32> to vector<8x32xf32>
    %69 = vector.extract_strided_slice %67 {offsets = [0, 32], sizes = [8, 32], strides = [1, 1]} : vector<8x128xf32> to vector<8x32xf32>
    %70 = vector.extract_strided_slice %67 {offsets = [0, 64], sizes = [8, 32], strides = [1, 1]} : vector<8x128xf32> to vector<8x32xf32>
    %71 = vector.extract_strided_slice %67 {offsets = [0, 96], sizes = [8, 32], strides = [1, 1]} : vector<8x128xf32> to vector<8x32xf32>
    %72 = arith.mulf %69, %59 : vector<8x32xf32>
    %73 = arith.mulf %68, %70 : vector<8x32xf32>
    %74 = arith.addf %72, %73 : vector<8x32xf32>
    %75 = math.tanh %74 : vector<8x32xf32>
    %76 = arith.mulf %71, %75 : vector<8x32xf32>
    %77 = arith.select %30, %76, %59 : vector<8x32xi1>, vector<8x32xf32>
    %78 = arith.select %30, %74, %59 : vector<8x32xi1>, vector<8x32xf32>
    %79 = vector.extract_strided_slice %11 {offsets = [56, 128], sizes = [8, 128], strides = [1, 1]} : vector<64x256xf32> to vector<8x128xf32>
    %80 = arith.truncf %59 : vector<8x32xf32> to vector<8x32xbf16>
    %cst_17 = arith.constant dense<0.000000e+00> : vector<8x128xf32>
    %81 = tpu.matmul %80, %13, %cst_17 {dimension_numbers = #tpu.dot_dimension_numbers<[1], [0], [0], [1], [0, 0, 1, 1], [], []>} : vector<8x32xbf16>, vector<32x128xbf16>, vector<8x128xf32> -> vector<8x128xf32>
    %82 = arith.addf %79, %81 : vector<8x128xf32>
    %83 = arith.mulf %82, %23 : vector<8x128xf32>
    %84 = math.tanh %83 : vector<8x128xf32>
    %85 = arith.mulf %84, %23 : vector<8x128xf32>
    %86 = arith.addf %85, %26 : vector<8x128xf32>
    %87 = vector.extract_strided_slice %86 {offsets = [0, 0], sizes = [8, 32], strides = [1, 1]} : vector<8x128xf32> to vector<8x32xf32>
    %88 = vector.extract_strided_slice %86 {offsets = [0, 32], sizes = [8, 32], strides = [1, 1]} : vector<8x128xf32> to vector<8x32xf32>
    %89 = vector.extract_strided_slice %86 {offsets = [0, 64], sizes = [8, 32], strides = [1, 1]} : vector<8x128xf32> to vector<8x32xf32>
    %90 = vector.extract_strided_slice %86 {offsets = [0, 96], sizes = [8, 32], strides = [1, 1]} : vector<8x128xf32> to vector<8x32xf32>
    %91 = arith.mulf %88, %59 : vector<8x32xf32>
    %92 = arith.mulf %87, %89 : vector<8x32xf32>
    %93 = arith.addf %91, %92 : vector<8x32xf32>
    %94 = math.tanh %93 : vector<8x32xf32>
    %95 = arith.mulf %90, %94 : vector<8x32xf32>
    %96 = arith.select %58, %95, %59 : vector<8x32xi1>, vector<8x32xf32>
    %97 = arith.select %58, %93, %59 : vector<8x32xi1>, vector<8x32xf32>
    %98 = vector.extract_strided_slice %11 {offsets = [8, 0], sizes = [8, 128], strides = [1, 1]} : vector<64x256xf32> to vector<8x128xf32>
    %99 = arith.truncf %77 : vector<8x32xf32> to vector<8x32xbf16>
    %cst_18 = arith.constant dense<0.000000e+00> : vector<8x128xf32>
    %100 = tpu.matmul %99, %12, %cst_18 {dimension_numbers = #tpu.dot_dimension_numbers<[1], [0], [0], [1], [0, 0, 1, 1], [], []>} : vector<8x32xbf16>, vector<32x128xbf16>, vector<8x128xf32> -> vector<8x128xf32>
    %101 = arith.addf %98, %100 : vector<8x128xf32>
    %102 = arith.mulf %101, %23 : vector<8x128xf32>
    %103 = math.tanh %102 : vector<8x128xf32>
    %104 = arith.mulf %103, %23 : vector<8x128xf32>
    %105 = arith.addf %104, %26 : vector<8x128xf32>
    %106 = vector.extract_strided_slice %105 {offsets = [0, 0], sizes = [8, 32], strides = [1, 1]} : vector<8x128xf32> to vector<8x32xf32>
    %107 = vector.extract_strided_slice %105 {offsets = [0, 32], sizes = [8, 32], strides = [1, 1]} : vector<8x128xf32> to vector<8x32xf32>
    %108 = vector.extract_strided_slice %105 {offsets = [0, 64], sizes = [8, 32], strides = [1, 1]} : vector<8x128xf32> to vector<8x32xf32>
    %109 = vector.extract_strided_slice %105 {offsets = [0, 96], sizes = [8, 32], strides = [1, 1]} : vector<8x128xf32> to vector<8x32xf32>
    %110 = arith.mulf %107, %78 : vector<8x32xf32>
    %111 = arith.mulf %106, %108 : vector<8x32xf32>
    %112 = arith.addf %110, %111 : vector<8x32xf32>
    %113 = math.tanh %112 : vector<8x32xf32>
    %114 = arith.mulf %109, %113 : vector<8x32xf32>
    %115 = arith.select %34, %114, %77 : vector<8x32xi1>, vector<8x32xf32>
    %116 = arith.select %34, %112, %78 : vector<8x32xi1>, vector<8x32xf32>
    %117 = vector.extract_strided_slice %11 {offsets = [48, 128], sizes = [8, 128], strides = [1, 1]} : vector<64x256xf32> to vector<8x128xf32>
    %118 = arith.truncf %96 : vector<8x32xf32> to vector<8x32xbf16>
    %cst_19 = arith.constant dense<0.000000e+00> : vector<8x128xf32>
    %119 = tpu.matmul %118, %13, %cst_19 {dimension_numbers = #tpu.dot_dimension_numbers<[1], [0], [0], [1], [0, 0, 1, 1], [], []>} : vector<8x32xbf16>, vector<32x128xbf16>, vector<8x128xf32> -> vector<8x128xf32>
    %120 = arith.addf %117, %119 : vector<8x128xf32>
    %121 = arith.mulf %120, %23 : vector<8x128xf32>
    %122 = math.tanh %121 : vector<8x128xf32>
    %123 = arith.mulf %122, %23 : vector<8x128xf32>
    %124 = arith.addf %123, %26 : vector<8x128xf32>
    %125 = vector.extract_strided_slice %124 {offsets = [0, 0], sizes = [8, 32], strides = [1, 1]} : vector<8x128xf32> to vector<8x32xf32>
    %126 = vector.extract_strided_slice %124 {offsets = [0, 32], sizes = [8, 32], strides = [1, 1]} : vector<8x128xf32> to vector<8x32xf32>
    %127 = vector.extract_strided_slice %124 {offsets = [0, 64], sizes = [8, 32], strides = [1, 1]} : vector<8x128xf32> to vector<8x32xf32>
    %128 = vector.extract_strided_slice %124 {offsets = [0, 96], sizes = [8, 32], strides = [1, 1]} : vector<8x128xf32> to vector<8x32xf32>
    %129 = arith.mulf %126, %97 : vector<8x32xf32>
    %130 = arith.mulf %125, %127 : vector<8x32xf32>
    %131 = arith.addf %129, %130 : vector<8x32xf32>
    %132 = math.tanh %131 : vector<8x32xf32>
    %133 = arith.mulf %128, %132 : vector<8x32xf32>
    %134 = arith.select %54, %133, %96 : vector<8x32xi1>, vector<8x32xf32>
    %135 = arith.select %54, %131, %97 : vector<8x32xi1>, vector<8x32xf32>
    %136 = vector.extract_strided_slice %11 {offsets = [16, 0], sizes = [8, 128], strides = [1, 1]} : vector<64x256xf32> to vector<8x128xf32>
    %137 = arith.truncf %115 : vector<8x32xf32> to vector<8x32xbf16>
    %cst_20 = arith.constant dense<0.000000e+00> : vector<8x128xf32>
    %138 = tpu.matmul %137, %12, %cst_20 {dimension_numbers = #tpu.dot_dimension_numbers<[1], [0], [0], [1], [0, 0, 1, 1], [], []>} : vector<8x32xbf16>, vector<32x128xbf16>, vector<8x128xf32> -> vector<8x128xf32>
    %139 = arith.addf %136, %138 : vector<8x128xf32>
    %140 = arith.mulf %139, %23 : vector<8x128xf32>
    %141 = math.tanh %140 : vector<8x128xf32>
    %142 = arith.mulf %141, %23 : vector<8x128xf32>
    %143 = arith.addf %142, %26 : vector<8x128xf32>
    %144 = vector.extract_strided_slice %143 {offsets = [0, 0], sizes = [8, 32], strides = [1, 1]} : vector<8x128xf32> to vector<8x32xf32>
    %145 = vector.extract_strided_slice %143 {offsets = [0, 32], sizes = [8, 32], strides = [1, 1]} : vector<8x128xf32> to vector<8x32xf32>
    %146 = vector.extract_strided_slice %143 {offsets = [0, 64], sizes = [8, 32], strides = [1, 1]} : vector<8x128xf32> to vector<8x32xf32>
    %147 = vector.extract_strided_slice %143 {offsets = [0, 96], sizes = [8, 32], strides = [1, 1]} : vector<8x128xf32> to vector<8x32xf32>
    %148 = arith.mulf %145, %116 : vector<8x32xf32>
    %149 = arith.mulf %144, %146 : vector<8x32xf32>
    %150 = arith.addf %148, %149 : vector<8x32xf32>
    %151 = math.tanh %150 : vector<8x32xf32>
    %152 = arith.mulf %147, %151 : vector<8x32xf32>
    %153 = arith.select %38, %152, %115 : vector<8x32xi1>, vector<8x32xf32>
    %154 = arith.select %38, %150, %116 : vector<8x32xi1>, vector<8x32xf32>
    %155 = vector.extract_strided_slice %11 {offsets = [40, 128], sizes = [8, 128], strides = [1, 1]} : vector<64x256xf32> to vector<8x128xf32>
    %156 = arith.truncf %134 : vector<8x32xf32> to vector<8x32xbf16>
    %cst_21 = arith.constant dense<0.000000e+00> : vector<8x128xf32>
    %157 = tpu.matmul %156, %13, %cst_21 {dimension_numbers = #tpu.dot_dimension_numbers<[1], [0], [0], [1], [0, 0, 1, 1], [], []>} : vector<8x32xbf16>, vector<32x128xbf16>, vector<8x128xf32> -> vector<8x128xf32>
    %158 = arith.addf %155, %157 : vector<8x128xf32>
    %159 = arith.mulf %158, %23 : vector<8x128xf32>
    %160 = math.tanh %159 : vector<8x128xf32>
    %161 = arith.mulf %160, %23 : vector<8x128xf32>
    %162 = arith.addf %161, %26 : vector<8x128xf32>
    %163 = vector.extract_strided_slice %162 {offsets = [0, 0], sizes = [8, 32], strides = [1, 1]} : vector<8x128xf32> to vector<8x32xf32>
    %164 = vector.extract_strided_slice %162 {offsets = [0, 32], sizes = [8, 32], strides = [1, 1]} : vector<8x128xf32> to vector<8x32xf32>
    %165 = vector.extract_strided_slice %162 {offsets = [0, 64], sizes = [8, 32], strides = [1, 1]} : vector<8x128xf32> to vector<8x32xf32>
    %166 = vector.extract_strided_slice %162 {offsets = [0, 96], sizes = [8, 32], strides = [1, 1]} : vector<8x128xf32> to vector<8x32xf32>
    %167 = arith.mulf %164, %135 : vector<8x32xf32>
    %168 = arith.mulf %163, %165 : vector<8x32xf32>
    %169 = arith.addf %167, %168 : vector<8x32xf32>
    %170 = math.tanh %169 : vector<8x32xf32>
    %171 = arith.mulf %166, %170 : vector<8x32xf32>
    %172 = arith.select %50, %171, %134 : vector<8x32xi1>, vector<8x32xf32>
    %173 = arith.select %50, %169, %135 : vector<8x32xi1>, vector<8x32xf32>
    %174 = vector.extract_strided_slice %11 {offsets = [24, 0], sizes = [8, 128], strides = [1, 1]} : vector<64x256xf32> to vector<8x128xf32>
    %175 = arith.truncf %153 : vector<8x32xf32> to vector<8x32xbf16>
    %cst_22 = arith.constant dense<0.000000e+00> : vector<8x128xf32>
    %176 = tpu.matmul %175, %12, %cst_22 {dimension_numbers = #tpu.dot_dimension_numbers<[1], [0], [0], [1], [0, 0, 1, 1], [], []>} : vector<8x32xbf16>, vector<32x128xbf16>, vector<8x128xf32> -> vector<8x128xf32>
    %177 = arith.addf %174, %176 : vector<8x128xf32>
    %178 = arith.mulf %177, %23 : vector<8x128xf32>
    %179 = math.tanh %178 : vector<8x128xf32>
    %180 = arith.mulf %179, %23 : vector<8x128xf32>
    %181 = arith.addf %180, %26 : vector<8x128xf32>
    %182 = vector.extract_strided_slice %181 {offsets = [0, 0], sizes = [8, 32], strides = [1, 1]} : vector<8x128xf32> to vector<8x32xf32>
    %183 = vector.extract_strided_slice %181 {offsets = [0, 32], sizes = [8, 32], strides = [1, 1]} : vector<8x128xf32> to vector<8x32xf32>
    %184 = vector.extract_strided_slice %181 {offsets = [0, 64], sizes = [8, 32], strides = [1, 1]} : vector<8x128xf32> to vector<8x32xf32>
    %185 = vector.extract_strided_slice %181 {offsets = [0, 96], sizes = [8, 32], strides = [1, 1]} : vector<8x128xf32> to vector<8x32xf32>
    %186 = arith.mulf %183, %154 : vector<8x32xf32>
    %187 = arith.mulf %182, %184 : vector<8x32xf32>
    %188 = arith.addf %186, %187 : vector<8x32xf32>
    %189 = math.tanh %188 : vector<8x32xf32>
    %190 = arith.mulf %185, %189 : vector<8x32xf32>
    %191 = arith.select %42, %190, %153 : vector<8x32xi1>, vector<8x32xf32>
    %192 = arith.select %42, %188, %154 : vector<8x32xi1>, vector<8x32xf32>
    %193 = vector.extract_strided_slice %11 {offsets = [32, 128], sizes = [8, 128], strides = [1, 1]} : vector<64x256xf32> to vector<8x128xf32>
    %194 = arith.truncf %172 : vector<8x32xf32> to vector<8x32xbf16>
    %cst_23 = arith.constant dense<0.000000e+00> : vector<8x128xf32>
    %195 = tpu.matmul %194, %13, %cst_23 {dimension_numbers = #tpu.dot_dimension_numbers<[1], [0], [0], [1], [0, 0, 1, 1], [], []>} : vector<8x32xbf16>, vector<32x128xbf16>, vector<8x128xf32> -> vector<8x128xf32>
    %196 = arith.addf %193, %195 : vector<8x128xf32>
    %197 = arith.mulf %196, %23 : vector<8x128xf32>
    %198 = math.tanh %197 : vector<8x128xf32>
    %199 = arith.mulf %198, %23 : vector<8x128xf32>
    %200 = arith.addf %199, %26 : vector<8x128xf32>
    %201 = vector.extract_strided_slice %200 {offsets = [0, 0], sizes = [8, 32], strides = [1, 1]} : vector<8x128xf32> to vector<8x32xf32>
    %202 = vector.extract_strided_slice %200 {offsets = [0, 32], sizes = [8, 32], strides = [1, 1]} : vector<8x128xf32> to vector<8x32xf32>
    %203 = vector.extract_strided_slice %200 {offsets = [0, 64], sizes = [8, 32], strides = [1, 1]} : vector<8x128xf32> to vector<8x32xf32>
    %204 = vector.extract_strided_slice %200 {offsets = [0, 96], sizes = [8, 32], strides = [1, 1]} : vector<8x128xf32> to vector<8x32xf32>
    %205 = arith.mulf %202, %173 : vector<8x32xf32>
    %206 = arith.mulf %201, %203 : vector<8x32xf32>
    %207 = arith.addf %205, %206 : vector<8x32xf32>
    %208 = math.tanh %207 : vector<8x32xf32>
    %209 = arith.mulf %204, %208 : vector<8x32xf32>
    %210 = arith.select %46, %209, %172 : vector<8x32xi1>, vector<8x32xf32>
    %211 = arith.select %46, %207, %173 : vector<8x32xi1>, vector<8x32xf32>
    %212 = vector.extract_strided_slice %11 {offsets = [32, 0], sizes = [8, 128], strides = [1, 1]} : vector<64x256xf32> to vector<8x128xf32>
    %213 = arith.truncf %191 : vector<8x32xf32> to vector<8x32xbf16>
    %cst_24 = arith.constant dense<0.000000e+00> : vector<8x128xf32>
    %214 = tpu.matmul %213, %12, %cst_24 {dimension_numbers = #tpu.dot_dimension_numbers<[1], [0], [0], [1], [0, 0, 1, 1], [], []>} : vector<8x32xbf16>, vector<32x128xbf16>, vector<8x128xf32> -> vector<8x128xf32>
    %215 = arith.addf %212, %214 : vector<8x128xf32>
    %216 = arith.mulf %215, %23 : vector<8x128xf32>
    %217 = math.tanh %216 : vector<8x128xf32>
    %218 = arith.mulf %217, %23 : vector<8x128xf32>
    %219 = arith.addf %218, %26 : vector<8x128xf32>
    %220 = vector.extract_strided_slice %219 {offsets = [0, 0], sizes = [8, 32], strides = [1, 1]} : vector<8x128xf32> to vector<8x32xf32>
    %221 = vector.extract_strided_slice %219 {offsets = [0, 32], sizes = [8, 32], strides = [1, 1]} : vector<8x128xf32> to vector<8x32xf32>
    %222 = vector.extract_strided_slice %219 {offsets = [0, 64], sizes = [8, 32], strides = [1, 1]} : vector<8x128xf32> to vector<8x32xf32>
    %223 = vector.extract_strided_slice %219 {offsets = [0, 96], sizes = [8, 32], strides = [1, 1]} : vector<8x128xf32> to vector<8x32xf32>
    %224 = arith.mulf %221, %192 : vector<8x32xf32>
    %225 = arith.mulf %220, %222 : vector<8x32xf32>
    %226 = arith.addf %224, %225 : vector<8x32xf32>
    %227 = math.tanh %226 : vector<8x32xf32>
    %228 = arith.mulf %223, %227 : vector<8x32xf32>
    %229 = arith.select %46, %228, %191 : vector<8x32xi1>, vector<8x32xf32>
    %230 = arith.select %46, %226, %192 : vector<8x32xi1>, vector<8x32xf32>
    %231 = vector.extract_strided_slice %11 {offsets = [24, 128], sizes = [8, 128], strides = [1, 1]} : vector<64x256xf32> to vector<8x128xf32>
    %232 = arith.truncf %210 : vector<8x32xf32> to vector<8x32xbf16>
    %cst_25 = arith.constant dense<0.000000e+00> : vector<8x128xf32>
    %233 = tpu.matmul %232, %13, %cst_25 {dimension_numbers = #tpu.dot_dimension_numbers<[1], [0], [0], [1], [0, 0, 1, 1], [], []>} : vector<8x32xbf16>, vector<32x128xbf16>, vector<8x128xf32> -> vector<8x128xf32>
    %234 = arith.addf %231, %233 : vector<8x128xf32>
    %235 = arith.mulf %234, %23 : vector<8x128xf32>
    %236 = math.tanh %235 : vector<8x128xf32>
    %237 = arith.mulf %236, %23 : vector<8x128xf32>
    %238 = arith.addf %237, %26 : vector<8x128xf32>
    %239 = vector.extract_strided_slice %238 {offsets = [0, 0], sizes = [8, 32], strides = [1, 1]} : vector<8x128xf32> to vector<8x32xf32>
    %240 = vector.extract_strided_slice %238 {offsets = [0, 32], sizes = [8, 32], strides = [1, 1]} : vector<8x128xf32> to vector<8x32xf32>
    %241 = vector.extract_strided_slice %238 {offsets = [0, 64], sizes = [8, 32], strides = [1, 1]} : vector<8x128xf32> to vector<8x32xf32>
    %242 = vector.extract_strided_slice %238 {offsets = [0, 96], sizes = [8, 32], strides = [1, 1]} : vector<8x128xf32> to vector<8x32xf32>
    %243 = arith.mulf %240, %211 : vector<8x32xf32>
    %244 = arith.mulf %239, %241 : vector<8x32xf32>
    %245 = arith.addf %243, %244 : vector<8x32xf32>
    %246 = math.tanh %245 : vector<8x32xf32>
    %247 = arith.mulf %242, %246 : vector<8x32xf32>
    %248 = arith.select %42, %247, %210 : vector<8x32xi1>, vector<8x32xf32>
    %249 = arith.select %42, %245, %211 : vector<8x32xi1>, vector<8x32xf32>
    %250 = vector.extract_strided_slice %11 {offsets = [40, 0], sizes = [8, 128], strides = [1, 1]} : vector<64x256xf32> to vector<8x128xf32>
    %251 = arith.truncf %229 : vector<8x32xf32> to vector<8x32xbf16>
    %cst_26 = arith.constant dense<0.000000e+00> : vector<8x128xf32>
    %252 = tpu.matmul %251, %12, %cst_26 {dimension_numbers = #tpu.dot_dimension_numbers<[1], [0], [0], [1], [0, 0, 1, 1], [], []>} : vector<8x32xbf16>, vector<32x128xbf16>, vector<8x128xf32> -> vector<8x128xf32>
    %253 = arith.addf %250, %252 : vector<8x128xf32>
    %254 = arith.mulf %253, %23 : vector<8x128xf32>
    %255 = math.tanh %254 : vector<8x128xf32>
    %256 = arith.mulf %255, %23 : vector<8x128xf32>
    %257 = arith.addf %256, %26 : vector<8x128xf32>
    %258 = vector.extract_strided_slice %257 {offsets = [0, 0], sizes = [8, 32], strides = [1, 1]} : vector<8x128xf32> to vector<8x32xf32>
    %259 = vector.extract_strided_slice %257 {offsets = [0, 32], sizes = [8, 32], strides = [1, 1]} : vector<8x128xf32> to vector<8x32xf32>
    %260 = vector.extract_strided_slice %257 {offsets = [0, 64], sizes = [8, 32], strides = [1, 1]} : vector<8x128xf32> to vector<8x32xf32>
    %261 = vector.extract_strided_slice %257 {offsets = [0, 96], sizes = [8, 32], strides = [1, 1]} : vector<8x128xf32> to vector<8x32xf32>
    %262 = arith.mulf %259, %230 : vector<8x32xf32>
    %263 = arith.mulf %258, %260 : vector<8x32xf32>
    %264 = arith.addf %262, %263 : vector<8x32xf32>
    %265 = math.tanh %264 : vector<8x32xf32>
    %266 = arith.mulf %261, %265 : vector<8x32xf32>
    %267 = arith.select %50, %266, %229 : vector<8x32xi1>, vector<8x32xf32>
    %268 = arith.select %50, %264, %230 : vector<8x32xi1>, vector<8x32xf32>
    %269 = vector.extract_strided_slice %11 {offsets = [16, 128], sizes = [8, 128], strides = [1, 1]} : vector<64x256xf32> to vector<8x128xf32>
    %270 = arith.truncf %248 : vector<8x32xf32> to vector<8x32xbf16>
    %cst_27 = arith.constant dense<0.000000e+00> : vector<8x128xf32>
    %271 = tpu.matmul %270, %13, %cst_27 {dimension_numbers = #tpu.dot_dimension_numbers<[1], [0], [0], [1], [0, 0, 1, 1], [], []>} : vector<8x32xbf16>, vector<32x128xbf16>, vector<8x128xf32> -> vector<8x128xf32>
    %272 = arith.addf %269, %271 : vector<8x128xf32>
    %273 = arith.mulf %272, %23 : vector<8x128xf32>
    %274 = math.tanh %273 : vector<8x128xf32>
    %275 = arith.mulf %274, %23 : vector<8x128xf32>
    %276 = arith.addf %275, %26 : vector<8x128xf32>
    %277 = vector.extract_strided_slice %276 {offsets = [0, 0], sizes = [8, 32], strides = [1, 1]} : vector<8x128xf32> to vector<8x32xf32>
    %278 = vector.extract_strided_slice %276 {offsets = [0, 32], sizes = [8, 32], strides = [1, 1]} : vector<8x128xf32> to vector<8x32xf32>
    %279 = vector.extract_strided_slice %276 {offsets = [0, 64], sizes = [8, 32], strides = [1, 1]} : vector<8x128xf32> to vector<8x32xf32>
    %280 = vector.extract_strided_slice %276 {offsets = [0, 96], sizes = [8, 32], strides = [1, 1]} : vector<8x128xf32> to vector<8x32xf32>
    %281 = arith.mulf %278, %249 : vector<8x32xf32>
    %282 = arith.mulf %277, %279 : vector<8x32xf32>
    %283 = arith.addf %281, %282 : vector<8x32xf32>
    %284 = math.tanh %283 : vector<8x32xf32>
    %285 = arith.mulf %280, %284 : vector<8x32xf32>
    %286 = arith.select %38, %285, %248 : vector<8x32xi1>, vector<8x32xf32>
    %287 = arith.select %38, %283, %249 : vector<8x32xi1>, vector<8x32xf32>
    %288 = vector.extract_strided_slice %11 {offsets = [48, 0], sizes = [8, 128], strides = [1, 1]} : vector<64x256xf32> to vector<8x128xf32>
    %289 = arith.truncf %267 : vector<8x32xf32> to vector<8x32xbf16>
    %cst_28 = arith.constant dense<0.000000e+00> : vector<8x128xf32>
    %290 = tpu.matmul %289, %12, %cst_28 {dimension_numbers = #tpu.dot_dimension_numbers<[1], [0], [0], [1], [0, 0, 1, 1], [], []>} : vector<8x32xbf16>, vector<32x128xbf16>, vector<8x128xf32> -> vector<8x128xf32>
    %291 = arith.addf %288, %290 : vector<8x128xf32>
    %292 = arith.mulf %291, %23 : vector<8x128xf32>
    %293 = math.tanh %292 : vector<8x128xf32>
    %294 = arith.mulf %293, %23 : vector<8x128xf32>
    %295 = arith.addf %294, %26 : vector<8x128xf32>
    %296 = vector.extract_strided_slice %295 {offsets = [0, 0], sizes = [8, 32], strides = [1, 1]} : vector<8x128xf32> to vector<8x32xf32>
    %297 = vector.extract_strided_slice %295 {offsets = [0, 32], sizes = [8, 32], strides = [1, 1]} : vector<8x128xf32> to vector<8x32xf32>
    %298 = vector.extract_strided_slice %295 {offsets = [0, 64], sizes = [8, 32], strides = [1, 1]} : vector<8x128xf32> to vector<8x32xf32>
    %299 = vector.extract_strided_slice %295 {offsets = [0, 96], sizes = [8, 32], strides = [1, 1]} : vector<8x128xf32> to vector<8x32xf32>
    %300 = arith.mulf %297, %268 : vector<8x32xf32>
    %301 = arith.mulf %296, %298 : vector<8x32xf32>
    %302 = arith.addf %300, %301 : vector<8x32xf32>
    %303 = math.tanh %302 : vector<8x32xf32>
    %304 = arith.mulf %299, %303 : vector<8x32xf32>
    %305 = arith.select %54, %304, %267 : vector<8x32xi1>, vector<8x32xf32>
    %306 = arith.select %54, %302, %268 : vector<8x32xi1>, vector<8x32xf32>
    %307 = vector.extract_strided_slice %11 {offsets = [8, 128], sizes = [8, 128], strides = [1, 1]} : vector<64x256xf32> to vector<8x128xf32>
    %308 = arith.truncf %286 : vector<8x32xf32> to vector<8x32xbf16>
    %cst_29 = arith.constant dense<0.000000e+00> : vector<8x128xf32>
    %309 = tpu.matmul %308, %13, %cst_29 {dimension_numbers = #tpu.dot_dimension_numbers<[1], [0], [0], [1], [0, 0, 1, 1], [], []>} : vector<8x32xbf16>, vector<32x128xbf16>, vector<8x128xf32> -> vector<8x128xf32>
    %310 = arith.addf %307, %309 : vector<8x128xf32>
    %311 = arith.mulf %310, %23 : vector<8x128xf32>
    %312 = math.tanh %311 : vector<8x128xf32>
    %313 = arith.mulf %312, %23 : vector<8x128xf32>
    %314 = arith.addf %313, %26 : vector<8x128xf32>
    %315 = vector.extract_strided_slice %314 {offsets = [0, 0], sizes = [8, 32], strides = [1, 1]} : vector<8x128xf32> to vector<8x32xf32>
    %316 = vector.extract_strided_slice %314 {offsets = [0, 32], sizes = [8, 32], strides = [1, 1]} : vector<8x128xf32> to vector<8x32xf32>
    %317 = vector.extract_strided_slice %314 {offsets = [0, 64], sizes = [8, 32], strides = [1, 1]} : vector<8x128xf32> to vector<8x32xf32>
    %318 = vector.extract_strided_slice %314 {offsets = [0, 96], sizes = [8, 32], strides = [1, 1]} : vector<8x128xf32> to vector<8x32xf32>
    %319 = arith.mulf %316, %287 : vector<8x32xf32>
    %320 = arith.mulf %315, %317 : vector<8x32xf32>
    %321 = arith.addf %319, %320 : vector<8x32xf32>
    %322 = math.tanh %321 : vector<8x32xf32>
    %323 = arith.mulf %318, %322 : vector<8x32xf32>
    %324 = arith.select %34, %323, %286 : vector<8x32xi1>, vector<8x32xf32>
    %325 = arith.select %34, %321, %287 : vector<8x32xi1>, vector<8x32xf32>
    %326 = vector.extract_strided_slice %11 {offsets = [56, 0], sizes = [8, 128], strides = [1, 1]} : vector<64x256xf32> to vector<8x128xf32>
    %327 = arith.truncf %305 : vector<8x32xf32> to vector<8x32xbf16>
    %cst_30 = arith.constant dense<0.000000e+00> : vector<8x128xf32>
    %328 = tpu.matmul %327, %12, %cst_30 {dimension_numbers = #tpu.dot_dimension_numbers<[1], [0], [0], [1], [0, 0, 1, 1], [], []>} : vector<8x32xbf16>, vector<32x128xbf16>, vector<8x128xf32> -> vector<8x128xf32>
    %329 = arith.addf %326, %328 : vector<8x128xf32>
    %330 = arith.mulf %329, %23 : vector<8x128xf32>
    %331 = math.tanh %330 : vector<8x128xf32>
    %332 = arith.mulf %331, %23 : vector<8x128xf32>
    %333 = arith.addf %332, %26 : vector<8x128xf32>
    %334 = vector.extract_strided_slice %333 {offsets = [0, 0], sizes = [8, 32], strides = [1, 1]} : vector<8x128xf32> to vector<8x32xf32>
    %335 = vector.extract_strided_slice %333 {offsets = [0, 32], sizes = [8, 32], strides = [1, 1]} : vector<8x128xf32> to vector<8x32xf32>
    %336 = vector.extract_strided_slice %333 {offsets = [0, 64], sizes = [8, 32], strides = [1, 1]} : vector<8x128xf32> to vector<8x32xf32>
    %337 = vector.extract_strided_slice %333 {offsets = [0, 96], sizes = [8, 32], strides = [1, 1]} : vector<8x128xf32> to vector<8x32xf32>
    %338 = arith.mulf %335, %306 : vector<8x32xf32>
    %339 = arith.mulf %334, %336 : vector<8x32xf32>
    %340 = arith.addf %338, %339 : vector<8x32xf32>
    %341 = math.tanh %340 : vector<8x32xf32>
    %342 = arith.mulf %337, %341 : vector<8x32xf32>
    %343 = arith.select %58, %342, %305 : vector<8x32xi1>, vector<8x32xf32>
    %344 = vector.extract_strided_slice %11 {offsets = [0, 128], sizes = [8, 128], strides = [1, 1]} : vector<64x256xf32> to vector<8x128xf32>
    %345 = arith.truncf %324 : vector<8x32xf32> to vector<8x32xbf16>
    %cst_31 = arith.constant dense<0.000000e+00> : vector<8x128xf32>
    %346 = tpu.matmul %345, %13, %cst_31 {dimension_numbers = #tpu.dot_dimension_numbers<[1], [0], [0], [1], [0, 0, 1, 1], [], []>} : vector<8x32xbf16>, vector<32x128xbf16>, vector<8x128xf32> -> vector<8x128xf32>
    %347 = arith.addf %344, %346 : vector<8x128xf32>
    %348 = arith.mulf %347, %23 : vector<8x128xf32>
    %349 = math.tanh %348 : vector<8x128xf32>
    %350 = arith.mulf %349, %23 : vector<8x128xf32>
    %351 = arith.addf %350, %26 : vector<8x128xf32>
    %352 = vector.extract_strided_slice %351 {offsets = [0, 0], sizes = [8, 32], strides = [1, 1]} : vector<8x128xf32> to vector<8x32xf32>
    %353 = vector.extract_strided_slice %351 {offsets = [0, 32], sizes = [8, 32], strides = [1, 1]} : vector<8x128xf32> to vector<8x32xf32>
    %354 = vector.extract_strided_slice %351 {offsets = [0, 64], sizes = [8, 32], strides = [1, 1]} : vector<8x128xf32> to vector<8x32xf32>
    %355 = vector.extract_strided_slice %351 {offsets = [0, 96], sizes = [8, 32], strides = [1, 1]} : vector<8x128xf32> to vector<8x32xf32>
    %356 = arith.mulf %353, %325 : vector<8x32xf32>
    %357 = arith.mulf %352, %354 : vector<8x32xf32>
    %358 = arith.addf %356, %357 : vector<8x32xf32>
    %359 = math.tanh %358 : vector<8x32xf32>
    %360 = arith.mulf %355, %359 : vector<8x32xf32>
    %361 = arith.select %30, %360, %324 : vector<8x32xi1>, vector<8x32xf32>
    %362 = tpu.concatenate %343, %361 in 1 : vector<8x32xf32>, vector<8x32xf32> -> vector<8x64xf32>
    %c0_32 = arith.constant 0 : index
    %c0_33 = arith.constant 0 : index
    %363 = vector.load %arg7[%c0_32, %c0_33] : memref<8x64xf32, #tpu.memory_space<vmem>>, vector<8x64xf32>
    tpu.vector_store %arg7[%c0_32, %c0_33], %362 {strides = array<i32>} : memref<8x64xf32, #tpu.memory_space<vmem>>, vector<8x64xf32>,
    return
  }
  func.func @transform_0(%arg0: i32) -> (i32, i32) {
    %c0_i32 = arith.constant 0 : i32
    %c0_i32_0 = arith.constant 0 : i32
    %c0_i32_1 = arith.constant 0 : i32
    return %c0_i32, %c0_i32_0 : i32, i32
  }
  func.func @transform_1(%arg0: i32) -> (i32, i32) {
    %c0_i32 = arith.constant 0 : i32
    %c0_i32_0 = arith.constant 0 : i32
    %c0_i32_1 = arith.constant 0 : i32
    return %c0_i32, %c0_i32_0 : i32, i32
  }
  func.func @transform_2(%arg0: i32) -> (i32, i32) {
    %c0_i32 = arith.constant 0 : i32
    %c0_i32_0 = arith.constant 0 : i32
    %c0_i32_1 = arith.constant 0 : i32
    return %c0_i32, %c0_i32_0 : i32, i32
  }
  func.func @transform_3(%arg0: i32) -> (i32, i32) {
    %c0_i32 = arith.constant 0 : i32
    %c0_i32_0 = arith.constant 0 : i32
    %c0_i32_1 = arith.constant 0 : i32
    return %c0_i32, %c0_i32_0 : i32, i32
  }
  func.func @transform_4(%arg0: i32) -> (i32, i32) {
    %c0_i32 = arith.constant 0 : i32
    %c0_i32_0 = arith.constant 0 : i32
    %c0_i32_1 = arith.constant 0 : i32
    return %c0_i32, %c0_i32_0 : i32, i32
  }
  func.func @transform_5(%arg0: i32) -> (i32, i32) {
    %c0_i32 = arith.constant 0 : i32
    %c0_i32_0 = arith.constant 0 : i32
    %c0_i32_1 = arith.constant 0 : i32
    return %c0_i32, %c0_i32_0 : i32, i32
  }
  func.func @transform_6(%arg0: i32) -> (i32, i32) {
    %c0_i32 = arith.constant 0 : i32
    %c0_i32_0 = arith.constant 0 : i32
    %c0_i32_1 = arith.constant 0 : i32
    return %c0_i32, %c0_i32_0 : i32, i32
  }
}

</mosaic_0001>

<llo_original>
// kernel: forward.1
$region0: #{forward.1}
  #allocation0 [shape = 'u32[]', space=smem, size = 0x4, offset = 0x4, fixed_abs, tag = 'smem constant byte address 0x4 - core index']
  #allocation1 [shape = 'u32[144,128]{1,0:T(1,128)}', space=vmem, size = 0x12000, scoped, tag = 'internal scratch']
  %s0 = inlined_call_operand.vmem [shape: s32[64,1], index: 0, kind: input, shape index: {}]
  %s1 = inlined_call_operand.vmem [shape: s32[8,1], index: 1, kind: input, shape index: {}]
  %s2 = inlined_call_operand.vmem [shape: bf16[64,256], index: 2, kind: input, shape index: {}]
  %s3 = inlined_call_operand.vmem [shape: bf16[32,128], index: 3, kind: input, shape index: {}]
  %s4 = inlined_call_operand.vmem [shape: bf16[32,128], index: 4, kind: input, shape index: {}]
  %s5 = inlined_call_operand.vmem [shape: f32[1,256], index: 5, kind: input, shape index: {}]
  %s6 = inlined_call_operand.vmem [shape: f32[8,64], index: 6, kind: output, shape index: {}]
  %s7 = sld [smem:[#allocation0]]
  $region34: #{forward.1} parent=0
    _
  %s9 = ssub.s32 1, %s7
  %s10 = scalar_select 0, %s9, %s7
  // Predicated region
  $region2: #{forward.1} parent=0 // pred_check
    _
  $region3: #{forward.1} parent=0 // pred_check_branch
    %12 = sbr.rel (0) target = $region5
  $region4: #{forward.1} parent=0 // pred_region
    _
  $region5: #{forward.1} parent=0 // pred_fallthru
    _
  // Predicated region
  $region6: #{forward.1} parent=0 // pred_check
    _
  $region7: #{forward.1} parent=0 // pred_check_branch
    %14 = sbr.rel (0) target = $region9
  $region8: #{forward.1} parent=0 // pred_region
    _
  $region9: #{forward.1} parent=0 // pred_fallthru
    _
  // Predicated region
  $region10: #{forward.1} parent=0 // pred_check
    _
  $region11: #{forward.1} parent=0 // pred_check_branch
    %16 = sbr.rel (0) target = $region13
  $region12: #{forward.1} parent=0 // pred_region
    _
  $region13: #{forward.1} parent=0 // pred_fallthru
    _
  // Predicated region
  $region14: #{forward.1} parent=0 // pred_check
    _
  $region15: #{forward.1} parent=0 // pred_check_branch
    %18 = sbr.rel (0) target = $region17
  $region16: #{forward.1} parent=0 // pred_region
    _
  $region17: #{forward.1} parent=0 // pred_fallthru
    _
  // Predicated region
  $region18: #{forward.1} parent=0 // pred_check
    _
  $region19: #{forward.1} parent=0 // pred_check_branch
    %20 = sbr.rel (0) target = $region21
  $region20: #{forward.1} parent=0 // pred_region
    _
  $region21: #{forward.1} parent=0 // pred_fallthru
    _
  // Predicated region
  $region22: #{forward.1} parent=0 // pred_check
    _
  $region23: #{forward.1} parent=0 // pred_check_branch
    %22 = sbr.rel (0) target = $region25
  $region24: #{forward.1} parent=0 // pred_region
    _
  $region25: #{forward.1} parent=0 // pred_fallthru
    _
  %v24 = vld [vmem:[%s0] sm:$0xff]
  %v25 = vld [vmem:[%s0 + $0x8] sm:$0xff]
  %v26 = vld [vmem:[%s0 + $0x10] sm:$0xff]
  %v27 = vld [vmem:[%s0 + $0x18] sm:$0xff]
  %v28 = vld [vmem:[%s0 + $0x20] sm:$0xff]
  %v29 = vld [vmem:[%s0 + $0x28] sm:$0xff]
  %v30 = vld [vmem:[%s0 + $0x30] sm:$0xff]
  %v31 = vld [vmem:[%s0 + $0x38] sm:$0xff]
  %v32 = vlaneseq
  %v33 = vand.u32 %v32, 127
  %34 = vset.pattern.permute.xlu0 0
  %35 = vperm.xlu0 %34, %v24
  %v36 = vpop.permute.xlu0 %35
  %37 = vset.pattern.permute.xlu0 0
  %38 = vperm.xlu0 %37, %v25
  %v39 = vpop.permute.xlu0 %38
  %40 = vset.pattern.permute.xlu0 0
  %41 = vperm.xlu0 %40, %v26
  %v42 = vpop.permute.xlu0 %41
  %43 = vset.pattern.permute.xlu0 0
  %44 = vperm.xlu0 %43, %v27
  %v45 = vpop.permute.xlu0 %44
  %46 = vset.pattern.permute.xlu0 0
  %47 = vperm.xlu0 %46, %v28
  %v48 = vpop.permute.xlu0 %47
  %49 = vset.pattern.permute.xlu0 0
  %50 = vperm.xlu0 %49, %v29
  %v51 = vpop.permute.xlu0 %50
  %52 = vset.pattern.permute.xlu0 0
  %53 = vperm.xlu0 %52, %v30
  %v54 = vpop.permute.xlu0 %53
  %55 = vset.pattern.permute.xlu0 0
  %56 = vperm.xlu0 %55, %v31
  %v57 = vpop.permute.xlu0 %56
  %vm58 = vcmp.eq.s32.totalorder %v33, %v36
  %vm59 = vcmp.eq.s32.totalorder %v33, %v39
  %vm60 = vcmp.eq.s32.totalorder %v33, %v42
  %vm61 = vcmp.eq.s32.totalorder %v33, %v45
  %vm62 = vcmp.eq.s32.totalorder %v33, %v48
  %vm63 = vcmp.eq.s32.totalorder %v33, %v51
  %vm64 = vcmp.eq.s32.totalorder %v33, %v54
  %vm65 = vcmp.eq.s32.totalorder %v33, %v57
  %v66 = vsel %vm58, 1, 0
  %v67 = vsel %vm59, 1, 0
  %v68 = vsel %vm60, 1, 0
  %v69 = vsel %vm61, 1, 0
  %v70 = vsel %vm62, 1, 0
  %v71 = vsel %vm63, 1, 0
  %v72 = vsel %vm64, 1, 0
  %v73 = vsel %vm65, 1, 0
  %v74 = vcvt.s32.f32 %v66
  %v75 = vcvt.s32.f32 %v67
  %v76 = vcvt.s32.f32 %v68
  %v77 = vcvt.s32.f32 %v69
  %v78 = vcvt.s32.f32 %v70
  %v79 = vcvt.s32.f32 %v71
  %v80 = vcvt.s32.f32 %v72
  %v81 = vcvt.s32.f32 %v73
  %v82 = vpack.c.bf16 %v75, %v74
  %v83 = vpack.c.bf16 %v77, %v76
  %v84 = vpack.c.bf16 %v79, %v78
  %v85 = vpack.c.bf16 %v81, %v80
  %v86 = vld [vmem:[%s2] sm:$0xff]
  %v87 = vld [vmem:[%s2 + $0x8] sm:$0xff]
  %v88 = vld [vmem:[%s2 + $0x10] sm:$0xff]
  %v89 = vld [vmem:[%s2 + $0x18] sm:$0xff]
  %v90 = vld [vmem:[%s2 + $0x20] sm:$0xff]
  %v91 = vld [vmem:[%s2 + $0x28] sm:$0xff]
  %v92 = vld [vmem:[%s2 + $0x30] sm:$0xff]
  %v93 = vld [vmem:[%s2 + $0x38] sm:$0xff]
  %v94 = vld [vmem:[%s5] sm:$0x3]
  %v96 = vlaneseq
  %v97 = vshrl.u32 %v96, 7
  %v98 = vsub.s32 0, %v97
  %v99 = vrot.slane %v94, %v98
  %v100 = vlaneseq
  %v101 = vshrl.u32 %v100, 7
  %v102 = vsub.s32 1, %v101
  %v103 = vrot.slane %v94, %v102
  %v114 = vunpack.c.l.b16 %v86
  %v115 = vunpack.c.h.b16 %v86
  %v116 = vunpack.c.l.b16 %v87
  %v117 = vunpack.c.h.b16 %v87
  %v118 = vunpack.c.l.b16 %v88
  %v119 = vunpack.c.h.b16 %v88
  %v120 = vunpack.c.l.b16 %v89
  %v121 = vunpack.c.h.b16 %v89
  %v122 = vunpack.c.l.b16 %v90
  %v123 = vunpack.c.h.b16 %v90
  %v124 = vunpack.c.l.b16 %v91
  %v125 = vunpack.c.h.b16 %v91
  %v126 = vunpack.c.l.b16 %v92
  %v127 = vunpack.c.h.b16 %v92
  %v128 = vunpack.c.l.b16 %v93
  %v129 = vunpack.c.h.b16 %v93
  %v130 = vpack.c.b16 %v116, %v114
  %v131 = vpack.c.b16 %v117, %v115
  %v132 = vpack.c.b16 %v120, %v118
  %v133 = vpack.c.b16 %v121, %v119
  %v134 = vpack.c.b16 %v124, %v122
  %v135 = vpack.c.b16 %v125, %v123
  %v136 = vpack.c.b16 %v128, %v126
  %v137 = vpack.c.b16 %v129, %v127
  %vm146 = vcmask 523264
  %v148 = vsel %vm146, %v82, 0
  %v151 = vsel %vm146, %v83, 0
  %v154 = vsel %vm146, %v84, 0
  %v157 = vsel %vm146, %v85, 0
  %159 = vmatprep.subr.bf16.mxu0 %v131
  %160 = vmatpush1.bf16.msra.mxu0 %v130
  %161 = vmatprep.subr.bf16.mxu0 %v133
  %162 = vmatpush1.bf16.msra.mxu0 %v132
  %163 = vmatprep.subr.bf16.mxu0 %v135
  %164 = vmatpush1.bf16.msra.mxu0 %v134
  %165 = vmatprep.subr.bf16.mxu0 %v137
  %166 = vmatpush1.bf16.msra.mxu0 %v136
  %167 = vmatprep.subr.bf16.mxu0 0
  %168 = vmatpush1.bf16.msra.mxu0 0
  %169 = vmatprep.subr.bf16.mxu0 0
  %170 = vmatpush1.bf16.msra.mxu0 0
  %171 = vmatprep.subr.bf16.mxu0 0
  %172 = vmatpush1.bf16.msra.mxu0 0
  %173 = vmatprep.subr.bf16.mxu0 0
  %174 = vmatpush1.bf16.msra.mxu0 0
  %175 = vmatprep.subr.bf16.mxu0 0
  %176 = vmatpush1.bf16.msra.mxu0 0
  %177 = vmatprep.subr.bf16.mxu0 0
  %178 = vmatpush1.bf16.msra.mxu0 0
  %179 = vmatprep.subr.bf16.mxu0 0
  %180 = vmatpush1.bf16.msra.mxu0 0
  %181 = vmatprep.subr.bf16.mxu0 0
  %182 = vmatpush1.bf16.msra.mxu0 0
  %183 = vmatprep.subr.bf16.mxu0 0
  %184 = vmatpush1.bf16.msra.mxu0 0
  %185 = vmatprep.subr.bf16.mxu0 0
  %186 = vmatpush1.bf16.msra.mxu0 0
  %187 = vmatprep.subr.bf16.mxu0 0
  %188 = vmatpush1.bf16.msra.mxu0 0
  %189 = vmatprep.subr.bf16.mxu0 0
  %190 = vmatpush1.bf16.msra.mxu0 0
  %191 = vmatprep.mubr.bf16.mxu0 0
  %192 = vmatmul.mubr.bf16.gmra.mrb[0].mxu0 %v148
  %v193 = vpop.f32.mrb[0].mxu0
  %v194 = vadd.f32 %v99, %v193
  %v195 = vpop.f32.mrb[0].mxu0
  %v196 = vadd.f32 %v103, %v195
  %v197 = vpop.f32.mrb[0].mxu0
  %v198 = vadd.f32 %v99, %v197
  %v199 = vpop.f32.mrb[0].mxu0
  %v200 = vadd.f32 %v103, %v199
  %201 = vmatprep.mubr.bf16.mxu0 0
  %202 = vmatmul.mubr.bf16.gmra.mrb[0].mxu0 %v151
  %v203 = vpop.f32.mrb[0].mxu0
  %v204 = vadd.f32 %v99, %v203
  %v205 = vpop.f32.mrb[0].mxu0
  %v206 = vadd.f32 %v103, %v205
  %v207 = vpop.f32.mrb[0].mxu0
  %v208 = vadd.f32 %v99, %v207
  %v209 = vpop.f32.mrb[0].mxu0
  %v210 = vadd.f32 %v103, %v209
  %211 = vmatprep.mubr.bf16.mxu0 0
  %212 = vmatmul.mubr.bf16.gmra.mrb[0].mxu0 %v154
  %v213 = vpop.f32.mrb[0].mxu0
  %v214 = vadd.f32 %v99, %v213
  %v215 = vpop.f32.mrb[0].mxu0
  %v216 = vadd.f32 %v103, %v215
  %v217 = vpop.f32.mrb[0].mxu0
  %v218 = vadd.f32 %v99, %v217
  %v219 = vpop.f32.mrb[0].mxu0
  %v220 = vadd.f32 %v103, %v219
  %221 = vmatprep.mubr.bf16.mxu0 0
  %222 = vmatmul.mubr.bf16.gmra.mrb[0].mxu0 %v157
  %v223 = vpop.f32.mrb[0].mxu0
  %v224 = vadd.f32 %v99, %v223
  %v225 = vpop.f32.mrb[0].mxu0
  %v226 = vadd.f32 %v103, %v225
  %v227 = vpop.f32.mrb[0].mxu0
  %v228 = vadd.f32 %v99, %v227
  %v229 = vpop.f32.mrb[0].mxu0
  %v230 = vadd.f32 %v103, %v229
  %231 = vdwg.mxu0
  %v232 = vld [vmem:[%s3] sm:$0xf]
  %v233 = vld [vmem:[%s3 + $0x4] sm:$0xf]
  %v234 = vld [vmem:[%s3 + $0x8] sm:$0xf]
  %v235 = vld [vmem:[%s3 + $0xc] sm:$0xf]
  %v236 = vld [vmem:[%s4] sm:$0xf]
  %v237 = vld [vmem:[%s4 + $0x4] sm:$0xf]
  %v238 = vld [vmem:[%s4 + $0x8] sm:$0xf]
  %v239 = vld [vmem:[%s4 + $0xc] sm:$0xf]
  %v240 = vld [vmem:[%s1] sm:$0xff]
  %vm241 = vcmp.ge.s32.totalorder %v33, 64
  %vm242 = vcmp.lt.s32.totalorder %v33, 96
  %vm243 = vmand %vm241, %vm242
  %v244 = vsel %vm243, 1.0, 0.5
  %v245 = vsel %vm243, 0.0, 0.5
  %vm246 = vcmp.gt.s32.totalorder %v240, 0
  %v247 = vsel %vm246, 1, 0
  %248 = vset.pattern.permute.xlu0 0
  %249 = vperm.xlu0 %248, %v247
  %v250 = vpop.permute.xlu0 %249
  %vm251 = vcmp.eq.s32.totalorder %v250, 1
  %vm252 = vcmp.gt.s32.totalorder %v240, 1
  %v253 = vsel %vm252, 1, 0
  %254 = vset.pattern.permute.xlu0 0
  %255 = vperm.xlu0 %254, %v253
  %v256 = vpop.permute.xlu0 %255
  %vm257 = vcmp.eq.s32.totalorder %v256, 1
  %vm258 = vcmp.gt.s32.totalorder %v240, 2
  %v259 = vsel %vm258, 1, 0
  %260 = vset.pattern.permute.xlu0 0
  %261 = vperm.xlu0 %260, %v259
  %v262 = vpop.permute.xlu0 %261
  %vm263 = vcmp.eq.s32.totalorder %v262, 1
  %vm264 = vcmp.gt.s32.totalorder %v240, 3
  %v265 = vsel %vm264, 1, 0
  %266 = vset.pattern.permute.xlu0 0
  %267 = vperm.xlu0 %266, %v265
  %v268 = vpop.permute.xlu0 %267
  %vm269 = vcmp.eq.s32.totalorder %v268, 1
  %vm270 = vcmp.gt.s32.totalorder %v240, 4
  %v271 = vsel %vm270, 1, 0
  %272 = vset.pattern.permute.xlu0 0
  %273 = vperm.xlu0 %272, %v271
  %v274 = vpop.permute.xlu0 %273
  %vm275 = vcmp.eq.s32.totalorder %v274, 1
  %vm276 = vcmp.gt.s32.totalorder %v240, 5
  %v277 = vsel %vm276, 1, 0
  %278 = vset.pattern.permute.xlu0 0
  %279 = vperm.xlu0 %278, %v277
  %v280 = vpop.permute.xlu0 %279
  %vm281 = vcmp.eq.s32.totalorder %v280, 1
  %vm282 = vcmp.gt.s32.totalorder %v240, 6
  %v283 = vsel %vm282, 1, 0
  %284 = vset.pattern.permute.xlu0 0
  %285 = vperm.xlu0 %284, %v283
  %v286 = vpop.permute.xlu0 %285
  %vm287 = vcmp.eq.s32.totalorder %v286, 1
  %vm288 = vcmp.gt.s32.totalorder %v240, 7
  %v289 = vsel %vm288, 1, 0
  %290 = vset.pattern.permute.xlu0 0
  %291 = vperm.xlu0 %290, %v289
  %v292 = vpop.permute.xlu0 %291
  %vm293 = vcmp.eq.s32.totalorder %v292, 1
  %v298 = vunpack.c.l.b16 %v232
  %v299 = vunpack.c.l.b16 %v233
  %v300 = vunpack.c.l.b16 %v234
  %v301 = vunpack.c.l.b16 %v235
  %v302 = vpack.c.b16 %v299, %v298
  %v303 = vpack.c.b16 %v301, %v300
  %vm306 = vcmask 261120
  %v308 = vsel %vm306, 0, 0
  %310 = vmatprep.subr.bf16.mxu0 0
  %311 = vmatpush1.bf16.msra.mxu0 %v302
  %312 = vmatprep.subr.bf16.mxu0 0
  %313 = vmatpush1.bf16.msra.mxu0 %v303
  %314 = vmatprep.subr.bf16.mxu0 0
  %315 = vmatpush1.bf16.msra.mxu0 0
  %316 = vmatprep.subr.bf16.mxu0 0
  %317 = vmatpush1.bf16.msra.mxu0 0
  %318 = vmatprep.subr.bf16.mxu0 0
  %319 = vmatpush1.bf16.msra.mxu0 0
  %320 = vmatprep.subr.bf16.mxu0 0
  %321 = vmatpush1.bf16.msra.mxu0 0
  %322 = vmatprep.subr.bf16.mxu0 0
  %323 = vmatpush1.bf16.msra.mxu0 0
  %324 = vmatprep.subr.bf16.mxu0 0
  %325 = vmatpush1.bf16.msra.mxu0 0
  %326 = vmatprep.subr.bf16.mxu0 0
  %327 = vmatpush1.bf16.msra.mxu0 0
  %328 = vmatprep.subr.bf16.mxu0 0
  %329 = vmatpush1.bf16.msra.mxu0 0
  %330 = vmatprep.subr.bf16.mxu0 0
  %331 = vmatpush1.bf16.msra.mxu0 0
  %332 = vmatprep.subr.bf16.mxu0 0
  %333 = vmatpush1.bf16.msra.mxu0 0
  %334 = vmatprep.subr.bf16.mxu0 0
  %335 = vmatpush1.bf16.msra.mxu0 0
  %336 = vmatprep.subr.bf16.mxu0 0
  %337 = vmatpush1.bf16.msra.mxu0 0
  %338 = vmatprep.subr.bf16.mxu0 0
  %339 = vmatpush1.bf16.msra.mxu0 0
  %340 = vmatprep.subr.bf16.mxu0 0
  %341 = vmatpush1.bf16.msra.mxu0 0
  %342 = vmatprep.mubr.bf16.mxu0 0
  %343 = vmatmul.mubr.bf16.gmra.mrb[0].mxu0 %v308
  %v344 = vpop.f32.mrb[0].mxu0
  %v345 = vadd.f32 0.0, %v344
  %v346 = vpop.f32.mrb[0].mxu0
  %v347 = vpop.f32.mrb[0].mxu0
  %v348 = vpop.f32.mrb[0].mxu0
  %349 = vdwg.mxu0
  %v350 = vadd.f32 %v194, %v345
  %v351 = vmul.f32 %v350, %v244
  %v352 = vtanh.pop %v351
  %v353 = vmul.f32 %v352, %v244
  %v354 = vadd.f32 %v353, %v245
  %v355 = vmul.f32 %v354, 0.0
  %357 = vrot.lane.b32.xlu0 %v354, 64
  %v358 = vpop.permute.xlu0 %357
  %v360 = vmul.f32 %v354, %v358
  %362 = vrot.lane.b32.xlu0 %v360, 32
  %v363 = vpop.permute.xlu0 %362
  %v365 = vadd.f32 %v355, %v363
  %v366 = vtanh.pop %v365
  %368 = vrot.lane.b32.xlu0 %v366, 64
  %v369 = vpop.permute.xlu0 %368
  %v371 = vmul.f32 %v354, %v369
  %v372 = vsel %vm251, %v371, 0.0
  %v373 = vsel %vm251, %v365, 0.0
  %v378 = vunpack.c.l.b16 %v236
  %v379 = vunpack.c.l.b16 %v237
  %v380 = vunpack.c.l.b16 %v238
  %v381 = vunpack.c.l.b16 %v239
  %v382 = vpack.c.b16 %v379, %v378
  %v383 = vpack.c.b16 %v381, %v380
  %386 = vmatprep.subr.bf16.mxu0 0
  %387 = vmatpush1.bf16.msra.mxu0 %v382
  %388 = vmatprep.subr.bf16.mxu0 0
  %389 = vmatpush1.bf16.msra.mxu0 %v383
  %390 = vmatprep.subr.bf16.mxu0 0
  %391 = vmatpush1.bf16.msra.mxu0 0
  %392 = vmatprep.subr.bf16.mxu0 0
  %393 = vmatpush1.bf16.msra.mxu0 0
  %394 = vmatprep.subr.bf16.mxu0 0
  %395 = vmatpush1.bf16.msra.mxu0 0
  %396 = vmatprep.subr.bf16.mxu0 0
  %397 = vmatpush1.bf16.msra.mxu0 0
  %398 = vmatprep.subr.bf16.mxu0 0
  %399 = vmatpush1.bf16.msra.mxu0 0
  %400 = vmatprep.subr.bf16.mxu0 0
  %401 = vmatpush1.bf16.msra.mxu0 0
  %402 = vmatprep.subr.bf16.mxu0 0
  %403 = vmatpush1.bf16.msra.mxu0 0
  %404 = vmatprep.subr.bf16.mxu0 0
  %405 = vmatpush1.bf16.msra.mxu0 0
  %406 = vmatprep.subr.bf16.mxu0 0
  %407 = vmatpush1.bf16.msra.mxu0 0
  %408 = vmatprep.subr.bf16.mxu0 0
  %409 = vmatpush1.bf16.msra.mxu0 0
  %410 = vmatprep.subr.bf16.mxu0 0
  %411 = vmatpush1.bf16.msra.mxu0 0
  %412 = vmatprep.subr.bf16.mxu0 0
  %413 = vmatpush1.bf16.msra.mxu0 0
  %414 = vmatprep.subr.bf16.mxu0 0
  %415 = vmatpush1.bf16.msra.mxu0 0
  %416 = vmatprep.subr.bf16.mxu0 0
  %417 = vmatpush1.bf16.msra.mxu0 0
  %418 = vmatprep.mubr.bf16.mxu0 0
  %419 = vmatmul.mubr.bf16.gmra.mrb[0].mxu0 %v308
  %v420 = vpop.f32.mrb[0].mxu0
  %v421 = vadd.f32 0.0, %v420
  %v422 = vpop.f32.mrb[0].mxu0
  %v423 = vpop.f32.mrb[0].mxu0
  %v424 = vpop.f32.mrb[0].mxu0
  %425 = vdwg.mxu0
  %v426 = vadd.f32 %v230, %v421
  %v427 = vmul.f32 %v426, %v244
  %v428 = vtanh.pop %v427
  %v429 = vmul.f32 %v428, %v244
  %v430 = vadd.f32 %v429, %v245
  %v431 = vmul.f32 %v430, 0.0
  %433 = vrot.lane.b32.xlu0 %v430, 64
  %v434 = vpop.permute.xlu0 %433
  %v436 = vmul.f32 %v430, %v434
  %438 = vrot.lane.b32.xlu0 %v436, 32
  %v439 = vpop.permute.xlu0 %438
  %v441 = vadd.f32 %v431, %v439
  %v442 = vtanh.pop %v441
  %444 = vrot.lane.b32.xlu0 %v442, 64
  %v445 = vpop.permute.xlu0 %444
  %v447 = vmul.f32 %v430, %v445
  %v448 = vsel %vm293, %v447, 0.0
  %v449 = vsel %vm293, %v441, 0.0
  %v450 = vpack.c.bf16 %v372, %v372
  %452 = vrot.lane.b32.xlu0 %v450, 32
  %v453 = vpop.permute.xlu0 %452
  %v455 = vsel %vm306, %v453, 0
  %457 = vmatprep.subr.bf16.mxu0 0
  %458 = vmatpush1.bf16.msra.mxu0 %v302
  %459 = vmatprep.subr.bf16.mxu0 0
  %460 = vmatpush1.bf16.msra.mxu0 %v303
  %461 = vmatprep.subr.bf16.mxu0 0
  %462 = vmatpush1.bf16.msra.mxu0 0
  %463 = vmatprep.subr.bf16.mxu0 0
  %464 = vmatpush1.bf16.msra.mxu0 0
  %465 = vmatprep.subr.bf16.mxu0 0
  %466 = vmatpush1.bf16.msra.mxu0 0
  %467 = vmatprep.subr.bf16.mxu0 0
  %468 = vmatpush1.bf16.msra.mxu0 0
  %469 = vmatprep.subr.bf16.mxu0 0
  %470 = vmatpush1.bf16.msra.mxu0 0
  %471 = vmatprep.subr.bf16.mxu0 0
  %472 = vmatpush1.bf16.msra.mxu0 0
  %473 = vmatprep.subr.bf16.mxu0 0
  %474 = vmatpush1.bf16.msra.mxu0 0
  %475 = vmatprep.subr.bf16.mxu0 0
  %476 = vmatpush1.bf16.msra.mxu0 0
  %477 = vmatprep.subr.bf16.mxu0 0
  %478 = vmatpush1.bf16.msra.mxu0 0
  %479 = vmatprep.subr.bf16.mxu0 0
  %480 = vmatpush1.bf16.msra.mxu0 0
  %481 = vmatprep.subr.bf16.mxu0 0
  %482 = vmatpush1.bf16.msra.mxu0 0
  %483 = vmatprep.subr.bf16.mxu0 0
  %484 = vmatpush1.bf16.msra.mxu0 0
  %485 = vmatprep.subr.bf16.mxu0 0
  %486 = vmatpush1.bf16.msra.mxu0 0
  %487 = vmatprep.subr.bf16.mxu0 0
  %488 = vmatpush1.bf16.msra.mxu0 0
  %489 = vmatprep.mubr.bf16.mxu0 0
  %490 = vmatmul.mubr.bf16.gmra.mrb[0].mxu0 %v455
  %v491 = vpop.f32.mrb[0].mxu0
  %v492 = vadd.f32 0.0, %v491
  %v493 = vpop.f32.mrb[0].mxu0
  %v494 = vpop.f32.mrb[0].mxu0
  %v495 = vpop.f32.mrb[0].mxu0
  %496 = vdwg.mxu0
  %v497 = vadd.f32 %v198, %v492
  %v498 = vmul.f32 %v497, %v244
  %v499 = vtanh.pop %v498
  %v500 = vmul.f32 %v499, %v244
  %v501 = vadd.f32 %v500, %v245
  %v502 = vmul.f32 %v501, %v373
  %504 = vrot.lane.b32.xlu0 %v501, 64
  %v505 = vpop.permute.xlu0 %504
  %v507 = vmul.f32 %v501, %v505
  %509 = vrot.lane.b32.xlu0 %v507, 32
  %v510 = vpop.permute.xlu0 %509
  %v512 = vadd.f32 %v502, %v510
  %v513 = vtanh.pop %v512
  %515 = vrot.lane.b32.xlu0 %v513, 64
  %v516 = vpop.permute.xlu0 %515
  %v518 = vmul.f32 %v501, %v516
  %v519 = vsel %vm257, %v518, %v372
  %v520 = vsel %vm257, %v512, %v373
  %v521 = vpack.c.bf16 %v448, %v448
  %523 = vrot.lane.b32.xlu0 %v521, 32
  %v524 = vpop.permute.xlu0 %523
  %v526 = vsel %vm306, %v524, 0
  %528 = vmatprep.subr.bf16.mxu0 0
  %529 = vmatpush1.bf16.msra.mxu0 %v382
  %530 = vmatprep.subr.bf16.mxu0 0
  %531 = vmatpush1.bf16.msra.mxu0 %v383
  %532 = vmatprep.subr.bf16.mxu0 0
  %533 = vmatpush1.bf16.msra.mxu0 0
  %534 = vmatprep.subr.bf16.mxu0 0
  %535 = vmatpush1.bf16.msra.mxu0 0
  %536 = vmatprep.subr.bf16.mxu0 0
  %537 = vmatpush1.bf16.msra.mxu0 0
  %538 = vmatprep.subr.bf16.mxu0 0
  %539 = vmatpush1.bf16.msra.mxu0 0
  %540 = vmatprep.subr.bf16.mxu0 0
  %541 = vmatpush1.bf16.msra.mxu0 0
  %542 = vmatprep.subr.bf16.mxu0 0
  %543 = vmatpush1.bf16.msra.mxu0 0
  %544 = vmatprep.subr.bf16.mxu0 0
  %545 = vmatpush1.bf16.msra.mxu0 0
  %546 = vmatprep.subr.bf16.mxu0 0
  %547 = vmatpush1.bf16.msra.mxu0 0
  %548 = vmatprep.subr.bf16.mxu0 0
  %549 = vmatpush1.bf16.msra.mxu0 0
  %550 = vmatprep.subr.bf16.mxu0 0
  %551 = vmatpush1.bf16.msra.mxu0 0
  %552 = vmatprep.subr.bf16.mxu0 0
  %553 = vmatpush1.bf16.msra.mxu0 0
  %554 = vmatprep.subr.bf16.mxu0 0
  %555 = vmatpush1.bf16.msra.mxu0 0
  %556 = vmatprep.subr.bf16.mxu0 0
  %557 = vmatpush1.bf16.msra.mxu0 0
  %558 = vmatprep.subr.bf16.mxu0 0
  %559 = vmatpush1.bf16.msra.mxu0 0
  %560 = vmatprep.mubr.bf16.mxu0 0
  %561 = vmatmul.mubr.bf16.gmra.mrb[0].mxu0 %v526
  %v562 = vpop.f32.mrb[0].mxu0
  %v563 = vadd.f32 0.0, %v562
  %v564 = vpop.f32.mrb[0].mxu0
  %v565 = vpop.f32.mrb[0].mxu0
  %v566 = vpop.f32.mrb[0].mxu0
  %567 = vdwg.mxu0
  %v568 = vadd.f32 %v226, %v563
  %v569 = vmul.f32 %v568, %v244
  %v570 = vtanh.pop %v569
  %v571 = vmul.f32 %v570, %v244
  %v572 = vadd.f32 %v571, %v245
  %v573 = vmul.f32 %v572, %v449
  %575 = vrot.lane.b32.xlu0 %v572, 64
  %v576 = vpop.permute.xlu0 %575
  %v578 = vmul.f32 %v572, %v576
  %580 = vrot.lane.b32.xlu0 %v578, 32
  %v581 = vpop.permute.xlu0 %580
  %v583 = vadd.f32 %v573, %v581
  %v584 = vtanh.pop %v583
  %586 = vrot.lane.b32.xlu0 %v584, 64
  %v587 = vpop.permute.xlu0 %586
  %v589 = vmul.f32 %v572, %v587
  %v590 = vsel %vm287, %v589, %v448
  %v591 = vsel %vm287, %v583, %v449
  %v592 = vpack.c.bf16 %v519, %v519
  %594 = vrot.lane.b32.xlu0 %v592, 32
  %v595 = vpop.permute.xlu0 %594
  %v597 = vsel %vm306, %v595, 0
  %599 = vmatprep.subr.bf16.mxu0 0
  %600 = vmatpush1.bf16.msra.mxu0 %v302
  %601 = vmatprep.subr.bf16.mxu0 0
  %602 = vmatpush1.bf16.msra.mxu0 %v303
  %603 = vmatprep.subr.bf16.mxu0 0
  %604 = vmatpush1.bf16.msra.mxu0 0
  %605 = vmatprep.subr.bf16.mxu0 0
  %606 = vmatpush1.bf16.msra.mxu0 0
  %607 = vmatprep.subr.bf16.mxu0 0
  %608 = vmatpush1.bf16.msra.mxu0 0
  %609 = vmatprep.subr.bf16.mxu0 0
  %610 = vmatpush1.bf16.msra.mxu0 0
  %611 = vmatprep.subr.bf16.mxu0 0
  %612 = vmatpush1.bf16.msra.mxu0 0
  %613 = vmatprep.subr.bf16.mxu0 0
  %614 = vmatpush1.bf16.msra.mxu0 0
  %615 = vmatprep.subr.bf16.mxu0 0
  %616 = vmatpush1.bf16.msra.mxu0 0
  %617 = vmatprep.subr.bf16.mxu0 0
  %618 = vmatpush1.bf16.msra.mxu0 0
  %619 = vmatprep.subr.bf16.mxu0 0
  %620 = vmatpush1.bf16.msra.mxu0 0
  %621 = vmatprep.subr.bf16.mxu0 0
  %622 = vmatpush1.bf16.msra.mxu0 0
  %623 = vmatprep.subr.bf16.mxu0 0
  %624 = vmatpush1.bf16.msra.mxu0 0
  %625 = vmatprep.subr.bf16.mxu0 0
  %626 = vmatpush1.bf16.msra.mxu0 0
  %627 = vmatprep.subr.bf16.mxu0 0
  %628 = vmatpush1.bf16.msra.mxu0 0
  %629 = vmatprep.subr.bf16.mxu0 0
  %630 = vmatpush1.bf16.msra.mxu0 0
  %631 = vmatprep.mubr.bf16.mxu0 0
  %632 = vmatmul.mubr.bf16.gmra.mrb[0].mxu0 %v597
  %v633 = vpop.f32.mrb[0].mxu0
  %v634 = vadd.f32 0.0, %v633
  %v635 = vpop.f32.mrb[0].mxu0
  %v636 = vpop.f32.mrb[0].mxu0
  %v637 = vpop.f32.mrb[0].mxu0
  %638 = vdwg.mxu0
  %v639 = vadd.f32 %v204, %v634
  %v640 = vmul.f32 %v639, %v244
  %v641 = vtanh.pop %v640
  %v642 = vmul.f32 %v641, %v244
  %v643 = vadd.f32 %v642, %v245
  %v644 = vmul.f32 %v643, %v520
  %646 = vrot.lane.b32.xlu0 %v643, 64
  %v647 = vpop.permute.xlu0 %646
  %v649 = vmul.f32 %v643, %v647
  %651 = vrot.lane.b32.xlu0 %v649, 32
  %v652 = vpop.permute.xlu0 %651
  %v654 = vadd.f32 %v644, %v652
  %v655 = vtanh.pop %v654
  %657 = vrot.lane.b32.xlu0 %v655, 64
  %v658 = vpop.permute.xlu0 %657
  %v660 = vmul.f32 %v643, %v658
  %v661 = vsel %vm263, %v660, %v519
  %v662 = vsel %vm263, %v654, %v520
  %v663 = vpack.c.bf16 %v590, %v590
  %665 = vrot.lane.b32.xlu0 %v663, 32
  %v666 = vpop.permute.xlu0 %665
  %v668 = vsel %vm306, %v666, 0
  %670 = vmatprep.subr.bf16.mxu0 0
  %671 = vmatpush1.bf16.msra.mxu0 %v382
  %672 = vmatprep.subr.bf16.mxu0 0
  %673 = vmatpush1.bf16.msra.mxu0 %v383
  %674 = vmatprep.subr.bf16.mxu0 0
  %675 = vmatpush1.bf16.msra.mxu0 0
  %676 = vmatprep.subr.bf16.mxu0 0
  %677 = vmatpush1.bf16.msra.mxu0 0
  %678 = vmatprep.subr.bf16.mxu0 0
  %679 = vmatpush1.bf16.msra.mxu0 0
  %680 = vmatprep.subr.bf16.mxu0 0
  %681 = vmatpush1.bf16.msra.mxu0 0
  %682 = vmatprep.subr.bf16.mxu0 0
  %683 = vmatpush1.bf16.msra.mxu0 0
  %684 = vmatprep.subr.bf16.mxu0 0
  %685 = vmatpush1.bf16.msra.mxu0 0
  %686 = vmatprep.subr.bf16.mxu0 0
  %687 = vmatpush1.bf16.msra.mxu0 0
  %688 = vmatprep.subr.bf16.mxu0 0
  %689 = vmatpush1.bf16.msra.mxu0 0
  %690 = vmatprep.subr.bf16.mxu0 0
  %691 = vmatpush1.bf16.msra.mxu0 0
  %692 = vmatprep.subr.bf16.mxu0 0
  %693 = vmatpush1.bf16.msra.mxu0 0
  %694 = vmatprep.subr.bf16.mxu0 0
  %695 = vmatpush1.bf16.msra.mxu0 0
  %696 = vmatprep.subr.bf16.mxu0 0
  %697 = vmatpush1.bf16.msra.mxu0 0
  %698 = vmatprep.subr.bf16.mxu0 0
  %699 = vmatpush1.bf16.msra.mxu0 0
  %700 = vmatprep.subr.bf16.mxu0 0
  %701 = vmatpush1.bf16.msra.mxu0 0
  %702 = vmatprep.mubr.bf16.mxu0 0
  %703 = vmatmul.mubr.bf16.gmra.mrb[0].mxu0 %v668
  %v704 = vpop.f32.mrb[0].mxu0
  %v705 = vadd.f32 0.0, %v704
  %v706 = vpop.f32.mrb[0].mxu0
  %v707 = vpop.f32.mrb[0].mxu0
  %v708 = vpop.f32.mrb[0].mxu0
  %709 = vdwg.mxu0
  %v710 = vadd.f32 %v220, %v705
  %v711 = vmul.f32 %v710, %v244
  %v712 = vtanh.pop %v711
  %v713 = vmul.f32 %v712, %v244
  %v714 = vadd.f32 %v713, %v245
  %v715 = vmul.f32 %v714, %v591
  %717 = vrot.lane.b32.xlu0 %v714, 64
  %v718 = vpop.permute.xlu0 %717
  %v720 = vmul.f32 %v714, %v718
  %722 = vrot.lane.b32.xlu0 %v720, 32
  %v723 = vpop.permute.xlu0 %722
  %v725 = vadd.f32 %v715, %v723
  %v726 = vtanh.pop %v725
  %728 = vrot.lane.b32.xlu0 %v726, 64
  %v729 = vpop.permute.xlu0 %728
  %v731 = vmul.f32 %v714, %v729
  %v732 = vsel %vm281, %v731, %v590
  %v733 = vsel %vm281, %v725, %v591
  %v734 = vpack.c.bf16 %v661, %v661
  %736 = vrot.lane.b32.xlu0 %v734, 32
  %v737 = vpop.permute.xlu0 %736
  %v739 = vsel %vm306, %v737, 0
  %741 = vmatprep.subr.bf16.mxu0 0
  %742 = vmatpush1.bf16.msra.mxu0 %v302
  %743 = vmatprep.subr.bf16.mxu0 0
  %744 = vmatpush1.bf16.msra.mxu0 %v303
  %745 = vmatprep.subr.bf16.mxu0 0
  %746 = vmatpush1.bf16.msra.mxu0 0
  %747 = vmatprep.subr.bf16.mxu0 0
  %748 = vmatpush1.bf16.msra.mxu0 0
  %749 = vmatprep.subr.bf16.mxu0 0
  %750 = vmatpush1.bf16.msra.mxu0 0
  %751 = vmatprep.subr.bf16.mxu0 0
  %752 = vmatpush1.bf16.msra.mxu0 0
  %753 = vmatprep.subr.bf16.mxu0 0
  %754 = vmatpush1.bf16.msra.mxu0 0
  %755 = vmatprep.subr.bf16.mxu0 0
  %756 = vmatpush1.bf16.msra.mxu0 0
  %757 = vmatprep.subr.bf16.mxu0 0
  %758 = vmatpush1.bf16.msra.mxu0 0
  %759 = vmatprep.subr.bf16.mxu0 0
  %760 = vmatpush1.bf16.msra.mxu0 0
  %761 = vmatprep.subr.bf16.mxu0 0
  %762 = vmatpush1.bf16.msra.mxu0 0
  %763 = vmatprep.subr.bf16.mxu0 0
  %764 = vmatpush1.bf16.msra.mxu0 0
  %765 = vmatprep.subr.bf16.mxu0 0
  %766 = vmatpush1.bf16.msra.mxu0 0
  %767 = vmatprep.subr.bf16.mxu0 0
  %768 = vmatpush1.bf16.msra.mxu0 0
  %769 = vmatprep.subr.bf16.mxu0 0
  %770 = vmatpush1.bf16.msra.mxu0 0
  %771 = vmatprep.subr.bf16.mxu0 0
  %772 = vmatpush1.bf16.msra.mxu0 0
  %773 = vmatprep.mubr.bf16.mxu0 0
  %774 = vmatmul.mubr.bf16.gmra.mrb[0].mxu0 %v739
  %v775 = vpop.f32.mrb[0].mxu0
  %v776 = vadd.f32 0.0, %v775
  %v777 = vpop.f32.mrb[0].mxu0
  %v778 = vpop.f32.mrb[0].mxu0
  %v779 = vpop.f32.mrb[0].mxu0
  %780 = vdwg.mxu0
  %v781 = vadd.f32 %v208, %v776
  %v782 = vmul.f32 %v781, %v244
  %v783 = vtanh.pop %v782
  %v784 = vmul.f32 %v783, %v244
  %v785 = vadd.f32 %v784, %v245
  %v786 = vmul.f32 %v785, %v662
  %788 = vrot.lane.b32.xlu0 %v785, 64
  %v789 = vpop.permute.xlu0 %788
  %v791 = vmul.f32 %v785, %v789
  %793 = vrot.lane.b32.xlu0 %v791, 32
  %v794 = vpop.permute.xlu0 %793
  %v796 = vadd.f32 %v786, %v794
  %v797 = vtanh.pop %v796
  %799 = vrot.lane.b32.xlu0 %v797, 64
  %v800 = vpop.permute.xlu0 %799
  %v802 = vmul.f32 %v785, %v800
  %v803 = vsel %vm269, %v802, %v661
  %v804 = vsel %vm269, %v796, %v662
  %v805 = vpack.c.bf16 %v732, %v732
  %807 = vrot.lane.b32.xlu0 %v805, 32
  %v808 = vpop.permute.xlu0 %807
  %v810 = vsel %vm306, %v808, 0
  %812 = vmatprep.subr.bf16.mxu0 0
  %813 = vmatpush1.bf16.msra.mxu0 %v382
  %814 = vmatprep.subr.bf16.mxu0 0
  %815 = vmatpush1.bf16.msra.mxu0 %v383
  %816 = vmatprep.subr.bf16.mxu0 0
  %817 = vmatpush1.bf16.msra.mxu0 0
  %818 = vmatprep.subr.bf16.mxu0 0
  %819 = vmatpush1.bf16.msra.mxu0 0
  %820 = vmatprep.subr.bf16.mxu0 0
  %821 = vmatpush1.bf16.msra.mxu0 0
  %822 = vmatprep.subr.bf16.mxu0 0
  %823 = vmatpush1.bf16.msra.mxu0 0
  %824 = vmatprep.subr.bf16.mxu0 0
  %825 = vmatpush1.bf16.msra.mxu0 0
  %826 = vmatprep.subr.bf16.mxu0 0
  %827 = vmatpush1.bf16.msra.mxu0 0
  %828 = vmatprep.subr.bf16.mxu0 0
  %829 = vmatpush1.bf16.msra.mxu0 0
  %830 = vmatprep.subr.bf16.mxu0 0
  %831 = vmatpush1.bf16.msra.mxu0 0
  %832 = vmatprep.subr.bf16.mxu0 0
  %833 = vmatpush1.bf16.msra.mxu0 0
  %834 = vmatprep.subr.bf16.mxu0 0
  %835 = vmatpush1.bf16.msra.mxu0 0
  %836 = vmatprep.subr.bf16.mxu0 0
  %837 = vmatpush1.bf16.msra.mxu0 0
  %838 = vmatprep.subr.bf16.mxu0 0
  %839 = vmatpush1.bf16.msra.mxu0 0
  %840 = vmatprep.subr.bf16.mxu0 0
  %841 = vmatpush1.bf16.msra.mxu0 0
  %842 = vmatprep.subr.bf16.mxu0 0
  %843 = vmatpush1.bf16.msra.mxu0 0
  %844 = vmatprep.mubr.bf16.mxu0 0
  %845 = vmatmul.mubr.bf16.gmra.mrb[0].mxu0 %v810
  %v846 = vpop.f32.mrb[0].mxu0
  %v847 = vadd.f32 0.0, %v846
  %v848 = vpop.f32.mrb[0].mxu0
  %v849 = vpop.f32.mrb[0].mxu0
  %v850 = vpop.f32.mrb[0].mxu0
  %851 = vdwg.mxu0
  %v852 = vadd.f32 %v216, %v847
  %v853 = vmul.f32 %v852, %v244
  %v854 = vtanh.pop %v853
  %v855 = vmul.f32 %v854, %v244
  %v856 = vadd.f32 %v855, %v245
  %v857 = vmul.f32 %v856, %v733
  %859 = vrot.lane.b32.xlu0 %v856, 64
  %v860 = vpop.permute.xlu0 %859
  %v862 = vmul.f32 %v856, %v860
  %864 = vrot.lane.b32.xlu0 %v862, 32
  %v865 = vpop.permute.xlu0 %864
  %v867 = vadd.f32 %v857, %v865
  %v868 = vtanh.pop %v867
  %870 = vrot.lane.b32.xlu0 %v868, 64
  %v871 = vpop.permute.xlu0 %870
  %v873 = vmul.f32 %v856, %v871
  %v874 = vsel %vm275, %v873, %v732
  %v875 = vsel %vm275, %v867, %v733
  %v876 = vpack.c.bf16 %v803, %v803
  %878 = vrot.lane.b32.xlu0 %v876, 32
  %v879 = vpop.permute.xlu0 %878
  %v881 = vsel %vm306, %v879, 0
  %883 = vmatprep.subr.bf16.mxu0 0
  %884 = vmatpush1.bf16.msra.mxu0 %v302
  %885 = vmatprep.subr.bf16.mxu0 0
  %886 = vmatpush1.bf16.msra.mxu0 %v303
  %887 = vmatprep.subr.bf16.mxu0 0
  %888 = vmatpush1.bf16.msra.mxu0 0
  %889 = vmatprep.subr.bf16.mxu0 0
  %890 = vmatpush1.bf16.msra.mxu0 0
  %891 = vmatprep.subr.bf16.mxu0 0
  %892 = vmatpush1.bf16.msra.mxu0 0
  %893 = vmatprep.subr.bf16.mxu0 0
  %894 = vmatpush1.bf16.msra.mxu0 0
  %895 = vmatprep.subr.bf16.mxu0 0
  %896 = vmatpush1.bf16.msra.mxu0 0
  %897 = vmatprep.subr.bf16.mxu0 0
  %898 = vmatpush1.bf16.msra.mxu0 0
  %899 = vmatprep.subr.bf16.mxu0 0
  %900 = vmatpush1.bf16.msra.mxu0 0
  %901 = vmatprep.subr.bf16.mxu0 0
  %902 = vmatpush1.bf16.msra.mxu0 0
  %903 = vmatprep.subr.bf16.mxu0 0
  %904 = vmatpush1.bf16.msra.mxu0 0
  %905 = vmatprep.subr.bf16.mxu0 0
  %906 = vmatpush1.bf16.msra.mxu0 0
  %907 = vmatprep.subr.bf16.mxu0 0
  %908 = vmatpush1.bf16.msra.mxu0 0
  %909 = vmatprep.subr.bf16.mxu0 0
  %910 = vmatpush1.bf16.msra.mxu0 0
  %911 = vmatprep.subr.bf16.mxu0 0
  %912 = vmatpush1.bf16.msra.mxu0 0
  %913 = vmatprep.subr.bf16.mxu0 0
  %914 = vmatpush1.bf16.msra.mxu0 0
  %915 = vmatprep.mubr.bf16.mxu0 0
  %916 = vmatmul.mubr.bf16.gmra.mrb[0].mxu0 %v881
  %v917 = vpop.f32.mrb[0].mxu0
  %v918 = vadd.f32 0.0, %v917
  %v919 = vpop.f32.mrb[0].mxu0
  %v920 = vpop.f32.mrb[0].mxu0
  %v921 = vpop.f32.mrb[0].mxu0
  %922 = vdwg.mxu0
  %v923 = vadd.f32 %v214, %v918
  %v924 = vmul.f32 %v923, %v244
  %v925 = vtanh.pop %v924
  %v926 = vmul.f32 %v925, %v244
  %v927 = vadd.f32 %v926, %v245
  %v928 = vmul.f32 %v927, %v804
  %930 = vrot.lane.b32.xlu0 %v927, 64
  %v931 = vpop.permute.xlu0 %930
  %v933 = vmul.f32 %v927, %v931
  %935 = vrot.lane.b32.xlu0 %v933, 32
  %v936 = vpop.permute.xlu0 %935
  %v938 = vadd.f32 %v928, %v936
  %v939 = vtanh.pop %v938
  %941 = vrot.lane.b32.xlu0 %v939, 64
  %v942 = vpop.permute.xlu0 %941
  %v944 = vmul.f32 %v927, %v942
  %v945 = vsel %vm275, %v944, %v803
  %v946 = vsel %vm275, %v938, %v804
  %v947 = vpack.c.bf16 %v874, %v874
  %949 = vrot.lane.b32.xlu0 %v947, 32
  %v950 = vpop.permute.xlu0 %949
  %v952 = vsel %vm306, %v950, 0
  %954 = vmatprep.subr.bf16.mxu0 0
  %955 = vmatpush1.bf16.msra.mxu0 %v382
  %956 = vmatprep.subr.bf16.mxu0 0
  %957 = vmatpush1.bf16.msra.mxu0 %v383
  %958 = vmatprep.subr.bf16.mxu0 0
  %959 = vmatpush1.bf16.msra.mxu0 0
  %960 = vmatprep.subr.bf16.mxu0 0
  %961 = vmatpush1.bf16.msra.mxu0 0
  %962 = vmatprep.subr.bf16.mxu0 0
  %963 = vmatpush1.bf16.msra.mxu0 0
  %964 = vmatprep.subr.bf16.mxu0 0
  %965 = vmatpush1.bf16.msra.mxu0 0
  %966 = vmatprep.subr.bf16.mxu0 0
  %967 = vmatpush1.bf16.msra.mxu0 0
  %968 = vmatprep.subr.bf16.mxu0 0
  %969 = vmatpush1.bf16.msra.mxu0 0
  %970 = vmatprep.subr.bf16.mxu0 0
  %971 = vmatpush1.bf16.msra.mxu0 0
  %972 = vmatprep.subr.bf16.mxu0 0
  %973 = vmatpush1.bf16.msra.mxu0 0
  %974 = vmatprep.subr.bf16.mxu0 0
  %975 = vmatpush1.bf16.msra.mxu0 0
  %976 = vmatprep.subr.bf16.mxu0 0
  %977 = vmatpush1.bf16.msra.mxu0 0
  %978 = vmatprep.subr.bf16.mxu0 0
  %979 = vmatpush1.bf16.msra.mxu0 0
  %980 = vmatprep.subr.bf16.mxu0 0
  %981 = vmatpush1.bf16.msra.mxu0 0
  %982 = vmatprep.subr.bf16.mxu0 0
  %983 = vmatpush1.bf16.msra.mxu0 0
  %984 = vmatprep.subr.bf16.mxu0 0
  %985 = vmatpush1.bf16.msra.mxu0 0
  %986 = vmatprep.mubr.bf16.mxu0 0
  %987 = vmatmul.mubr.bf16.gmra.mrb[0].mxu0 %v952
  %v988 = vpop.f32.mrb[0].mxu0
  %v989 = vadd.f32 0.0, %v988
  %v990 = vpop.f32.mrb[0].mxu0
  %v991 = vpop.f32.mrb[0].mxu0
  %v992 = vpop.f32.mrb[0].mxu0
  %993 = vdwg.mxu0
  %v994 = vadd.f32 %v210, %v989
  %v995 = vmul.f32 %v994, %v244
  %v996 = vtanh.pop %v995
  %v997 = vmul.f32 %v996, %v244
  %v998 = vadd.f32 %v997, %v245
  %v999 = vmul.f32 %v998, %v875
  %1001 = vrot.lane.b32.xlu0 %v998, 64
  %v1002 = vpop.permute.xlu0 %1001
  %v1004 = vmul.f32 %v998, %v1002
  %1006 = vrot.lane.b32.xlu0 %v1004, 32
  %v1007 = vpop.permute.xlu0 %1006
  %v1009 = vadd.f32 %v999, %v1007
  %v1010 = vtanh.pop %v1009
  %1012 = vrot.lane.b32.xlu0 %v1010, 64
  %v1013 = vpop.permute.xlu0 %1012
  %v1015 = vmul.f32 %v998, %v1013
  %v1016 = vsel %vm269, %v1015, %v874
  %v1017 = vsel %vm269, %v1009, %v875
  %v1018 = vpack.c.bf16 %v945, %v945
  %1020 = vrot.lane.b32.xlu0 %v1018, 32
  %v1021 = vpop.permute.xlu0 %1020
  %v1023 = vsel %vm306, %v1021, 0
  %1025 = vmatprep.subr.bf16.mxu0 0
  %1026 = vmatpush1.bf16.msra.mxu0 %v302
  %1027 = vmatprep.subr.bf16.mxu0 0
  %1028 = vmatpush1.bf16.msra.mxu0 %v303
  %1029 = vmatprep.subr.bf16.mxu0 0
  %1030 = vmatpush1.bf16.msra.mxu0 0
  %1031 = vmatprep.subr.bf16.mxu0 0
  %1032 = vmatpush1.bf16.msra.mxu0 0
  %1033 = vmatprep.subr.bf16.mxu0 0
  %1034 = vmatpush1.bf16.msra.mxu0 0
  %1035 = vmatprep.subr.bf16.mxu0 0
  %1036 = vmatpush1.bf16.msra.mxu0 0
  %1037 = vmatprep.subr.bf16.mxu0 0
  %1038 = vmatpush1.bf16.msra.mxu0 0
  %1039 = vmatprep.subr.bf16.mxu0 0
  %1040 = vmatpush1.bf16.msra.mxu0 0
  %1041 = vmatprep.subr.bf16.mxu0 0
  %1042 = vmatpush1.bf16.msra.mxu0 0
  %1043 = vmatprep.subr.bf16.mxu0 0
  %1044 = vmatpush1.bf16.msra.mxu0 0
  %1045 = vmatprep.subr.bf16.mxu0 0
  %1046 = vmatpush1.bf16.msra.mxu0 0
  %1047 = vmatprep.subr.bf16.mxu0 0
  %1048 = vmatpush1.bf16.msra.mxu0 0
  %1049 = vmatprep.subr.bf16.mxu0 0
  %1050 = vmatpush1.bf16.msra.mxu0 0
  %1051 = vmatprep.subr.bf16.mxu0 0
  %1052 = vmatpush1.bf16.msra.mxu0 0
  %1053 = vmatprep.subr.bf16.mxu0 0
  %1054 = vmatpush1.bf16.msra.mxu0 0
  %1055 = vmatprep.subr.bf16.mxu0 0
  %1056 = vmatpush1.bf16.msra.mxu0 0
  %1057 = vmatprep.mubr.bf16.mxu0 0
  %1058 = vmatmul.mubr.bf16.gmra.mrb[0].mxu0 %v1023
  %v1059 = vpop.f32.mrb[0].mxu0
  %v1060 = vadd.f32 0.0, %v1059
  %v1061 = vpop.f32.mrb[0].mxu0
  %v1062 = vpop.f32.mrb[0].mxu0
  %v1063 = vpop.f32.mrb[0].mxu0
  %1064 = vdwg.mxu0
  %v1065 = vadd.f32 %v218, %v1060
  %v1066 = vmul.f32 %v1065, %v244
  %v1067 = vtanh.pop %v1066
  %v1068 = vmul.f32 %v1067, %v244
  %v1069 = vadd.f32 %v1068, %v245
  %v1070 = vmul.f32 %v1069, %v946
  %1072 = vrot.lane.b32.xlu0 %v1069, 64
  %v1073 = vpop.permute.xlu0 %1072
  %v1075 = vmul.f32 %v1069, %v1073
  %1077 = vrot.lane.b32.xlu0 %v1075, 32
  %v1078 = vpop.permute.xlu0 %1077
  %v1080 = vadd.f32 %v1070, %v1078
  %v1081 = vtanh.pop %v1080
  %1083 = vrot.lane.b32.xlu0 %v1081, 64
  %v1084 = vpop.permute.xlu0 %1083
  %v1086 = vmul.f32 %v1069, %v1084
  %v1087 = vsel %vm281, %v1086, %v945
  %v1088 = vsel %vm281, %v1080, %v946
  %v1089 = vpack.c.bf16 %v1016, %v1016
  %1091 = vrot.lane.b32.xlu0 %v1089, 32
  %v1092 = vpop.permute.xlu0 %1091
  %v1094 = vsel %vm306, %v1092, 0
  %1096 = vmatprep.subr.bf16.mxu0 0
  %1097 = vmatpush1.bf16.msra.mxu0 %v382
  %1098 = vmatprep.subr.bf16.mxu0 0
  %1099 = vmatpush1.bf16.msra.mxu0 %v383
  %1100 = vmatprep.subr.bf16.mxu0 0
  %1101 = vmatpush1.bf16.msra.mxu0 0
  %1102 = vmatprep.subr.bf16.mxu0 0
  %1103 = vmatpush1.bf16.msra.mxu0 0
  %1104 = vmatprep.subr.bf16.mxu0 0
  %1105 = vmatpush1.bf16.msra.mxu0 0
  %1106 = vmatprep.subr.bf16.mxu0 0
  %1107 = vmatpush1.bf16.msra.mxu0 0
  %1108 = vmatprep.subr.bf16.mxu0 0
  %1109 = vmatpush1.bf16.msra.mxu0 0
  %1110 = vmatprep.subr.bf16.mxu0 0
  %1111 = vmatpush1.bf16.msra.mxu0 0
  %1112 = vmatprep.subr.bf16.mxu0 0
  %1113 = vmatpush1.bf16.msra.mxu0 0
  %1114 = vmatprep.subr.bf16.mxu0 0
  %1115 = vmatpush1.bf16.msra.mxu0 0
  %1116 = vmatprep.subr.bf16.mxu0 0
  %1117 = vmatpush1.bf16.msra.mxu0 0
  %1118 = vmatprep.subr.bf16.mxu0 0
  %1119 = vmatpush1.bf16.msra.mxu0 0
  %1120 = vmatprep.subr.bf16.mxu0 0
  %1121 = vmatpush1.bf16.msra.mxu0 0
  %1122 = vmatprep.subr.bf16.mxu0 0
  %1123 = vmatpush1.bf16.msra.mxu0 0
  %1124 = vmatprep.subr.bf16.mxu0 0
  %1125 = vmatpush1.bf16.msra.mxu0 0
  %1126 = vmatprep.subr.bf16.mxu0 0
  %1127 = vmatpush1.bf16.msra.mxu0 0
  %1128 = vmatprep.mubr.bf16.mxu0 0
  %1129 = vmatmul.mubr.bf16.gmra.mrb[0].mxu0 %v1094
  %v1130 = vpop.f32.mrb[0].mxu0
  %v1131 = vadd.f32 0.0, %v1130
  %v1132 = vpop.f32.mrb[0].mxu0
  %v1133 = vpop.f32.mrb[0].mxu0
  %v1134 = vpop.f32.mrb[0].mxu0
  %1135 = vdwg.mxu0
  %v1136 = vadd.f32 %v206, %v1131
  %v1137 = vmul.f32 %v1136, %v244
  %v1138 = vtanh.pop %v1137
  %v1139 = vmul.f32 %v1138, %v244
  %v1140 = vadd.f32 %v1139, %v245
  %v1141 = vmul.f32 %v1140, %v1017
  %1143 = vrot.lane.b32.xlu0 %v1140, 64
  %v1144 = vpop.permute.xlu0 %1143
  %v1146 = vmul.f32 %v1140, %v1144
  %1148 = vrot.lane.b32.xlu0 %v1146, 32
  %v1149 = vpop.permute.xlu0 %1148
  %v1151 = vadd.f32 %v1141, %v1149
  %v1152 = vtanh.pop %v1151
  %1154 = vrot.lane.b32.xlu0 %v1152, 64
  %v1155 = vpop.permute.xlu0 %1154
  %v1157 = vmul.f32 %v1140, %v1155
  %v1158 = vsel %vm263, %v1157, %v1016
  %v1159 = vsel %vm263, %v1151, %v1017
  %v1160 = vpack.c.bf16 %v1087, %v1087
  %1162 = vrot.lane.b32.xlu0 %v1160, 32
  %v1163 = vpop.permute.xlu0 %1162
  %v1165 = vsel %vm306, %v1163, 0
  %1167 = vmatprep.subr.bf16.mxu0 0
  %1168 = vmatpush1.bf16.msra.mxu0 %v302
  %1169 = vmatprep.subr.bf16.mxu0 0
  %1170 = vmatpush1.bf16.msra.mxu0 %v303
  %1171 = vmatprep.subr.bf16.mxu0 0
  %1172 = vmatpush1.bf16.msra.mxu0 0
  %1173 = vmatprep.subr.bf16.mxu0 0
  %1174 = vmatpush1.bf16.msra.mxu0 0
  %1175 = vmatprep.subr.bf16.mxu0 0
  %1176 = vmatpush1.bf16.msra.mxu0 0
  %1177 = vmatprep.subr.bf16.mxu0 0
  %1178 = vmatpush1.bf16.msra.mxu0 0
  %1179 = vmatprep.subr.bf16.mxu0 0
  %1180 = vmatpush1.bf16.msra.mxu0 0
  %1181 = vmatprep.subr.bf16.mxu0 0
  %1182 = vmatpush1.bf16.msra.mxu0 0
  %1183 = vmatprep.subr.bf16.mxu0 0
  %1184 = vmatpush1.bf16.msra.mxu0 0
  %1185 = vmatprep.subr.bf16.mxu0 0
  %1186 = vmatpush1.bf16.msra.mxu0 0
  %1187 = vmatprep.subr.bf16.mxu0 0
  %1188 = vmatpush1.bf16.msra.mxu0 0
  %1189 = vmatprep.subr.bf16.mxu0 0
  %1190 = vmatpush1.bf16.msra.mxu0 0
  %1191 = vmatprep.subr.bf16.mxu0 0
  %1192 = vmatpush1.bf16.msra.mxu0 0
  %1193 = vmatprep.subr.bf16.mxu0 0
  %1194 = vmatpush1.bf16.msra.mxu0 0
  %1195 = vmatprep.subr.bf16.mxu0 0
  %1196 = vmatpush1.bf16.msra.mxu0 0
  %1197 = vmatprep.subr.bf16.mxu0 0
  %1198 = vmatpush1.bf16.msra.mxu0 0
  %1199 = vmatprep.mubr.bf16.mxu0 0
  %1200 = vmatmul.mubr.bf16.gmra.mrb[0].mxu0 %v1165
  %v1201 = vpop.f32.mrb[0].mxu0
  %v1202 = vadd.f32 0.0, %v1201
  %v1203 = vpop.f32.mrb[0].mxu0
  %v1204 = vpop.f32.mrb[0].mxu0
  %v1205 = vpop.f32.mrb[0].mxu0
  %1206 = vdwg.mxu0
  %v1207 = vadd.f32 %v224, %v1202
  %v1208 = vmul.f32 %v1207, %v244
  %v1209 = vtanh.pop %v1208
  %v1210 = vmul.f32 %v1209, %v244
  %v1211 = vadd.f32 %v1210, %v245
  %v1212 = vmul.f32 %v1211, %v1088
  %1214 = vrot.lane.b32.xlu0 %v1211, 64
  %v1215 = vpop.permute.xlu0 %1214
  %v1217 = vmul.f32 %v1211, %v1215
  %1219 = vrot.lane.b32.xlu0 %v1217, 32
  %v1220 = vpop.permute.xlu0 %1219
  %v1222 = vadd.f32 %v1212, %v1220
  %v1223 = vtanh.pop %v1222
  %1225 = vrot.lane.b32.xlu0 %v1223, 64
  %v1226 = vpop.permute.xlu0 %1225
  %v1228 = vmul.f32 %v1211, %v1226
  %v1229 = vsel %vm287, %v1228, %v1087
  %v1230 = vsel %vm287, %v1222, %v1088
  %v1231 = vpack.c.bf16 %v1158, %v1158
  %1233 = vrot.lane.b32.xlu0 %v1231, 32
  %v1234 = vpop.permute.xlu0 %1233
  %v1236 = vsel %vm306, %v1234, 0
  %1238 = vmatprep.subr.bf16.mxu0 0
  %1239 = vmatpush1.bf16.msra.mxu0 %v382
  %1240 = vmatprep.subr.bf16.mxu0 0
  %1241 = vmatpush1.bf16.msra.mxu0 %v383
  %1242 = vmatprep.subr.bf16.mxu0 0
  %1243 = vmatpush1.bf16.msra.mxu0 0
  %1244 = vmatprep.subr.bf16.mxu0 0
  %1245 = vmatpush1.bf16.msra.mxu0 0
  %1246 = vmatprep.subr.bf16.mxu0 0
  %1247 = vmatpush1.bf16.msra.mxu0 0
  %1248 = vmatprep.subr.bf16.mxu0 0
  %1249 = vmatpush1.bf16.msra.mxu0 0
  %1250 = vmatprep.subr.bf16.mxu0 0
  %1251 = vmatpush1.bf16.msra.mxu0 0
  %1252 = vmatprep.subr.bf16.mxu0 0
  %1253 = vmatpush1.bf16.msra.mxu0 0
  %1254 = vmatprep.subr.bf16.mxu0 0
  %1255 = vmatpush1.bf16.msra.mxu0 0
  %1256 = vmatprep.subr.bf16.mxu0 0
  %1257 = vmatpush1.bf16.msra.mxu0 0
  %1258 = vmatprep.subr.bf16.mxu0 0
  %1259 = vmatpush1.bf16.msra.mxu0 0
  %1260 = vmatprep.subr.bf16.mxu0 0
  %1261 = vmatpush1.bf16.msra.mxu0 0
  %1262 = vmatprep.subr.bf16.mxu0 0
  %1263 = vmatpush1.bf16.msra.mxu0 0
  %1264 = vmatprep.subr.bf16.mxu0 0
  %1265 = vmatpush1.bf16.msra.mxu0 0
  %1266 = vmatprep.subr.bf16.mxu0 0
  %1267 = vmatpush1.bf16.msra.mxu0 0
  %1268 = vmatprep.subr.bf16.mxu0 0
  %1269 = vmatpush1.bf16.msra.mxu0 0
  %1270 = vmatprep.mubr.bf16.mxu0 0
  %1271 = vmatmul.mubr.bf16.gmra.mrb[0].mxu0 %v1236
  %v1272 = vpop.f32.mrb[0].mxu0
  %v1273 = vadd.f32 0.0, %v1272
  %v1274 = vpop.f32.mrb[0].mxu0
  %v1275 = vpop.f32.mrb[0].mxu0
  %v1276 = vpop.f32.mrb[0].mxu0
  %1277 = vdwg.mxu0
  %v1278 = vadd.f32 %v200, %v1273
  %v1279 = vmul.f32 %v1278, %v244
  %v1280 = vtanh.pop %v1279
  %v1281 = vmul.f32 %v1280, %v244
  %v1282 = vadd.f32 %v1281, %v245
  %v1283 = vmul.f32 %v1282, %v1159
  %1285 = vrot.lane.b32.xlu0 %v1282, 64
  %v1286 = vpop.permute.xlu0 %1285
  %v1288 = vmul.f32 %v1282, %v1286
  %1290 = vrot.lane.b32.xlu0 %v1288, 32
  %v1291 = vpop.permute.xlu0 %1290
  %v1293 = vadd.f32 %v1283, %v1291
  %v1294 = vtanh.pop %v1293
  %1296 = vrot.lane.b32.xlu0 %v1294, 64
  %v1297 = vpop.permute.xlu0 %1296
  %v1299 = vmul.f32 %v1282, %v1297
  %v1300 = vsel %vm257, %v1299, %v1158
  %v1301 = vsel %vm257, %v1293, %v1159
  %v1302 = vpack.c.bf16 %v1229, %v1229
  %1304 = vrot.lane.b32.xlu0 %v1302, 32
  %v1305 = vpop.permute.xlu0 %1304
  %v1307 = vsel %vm306, %v1305, 0
  %1309 = vmatprep.subr.bf16.mxu0 0
  %1310 = vmatpush1.bf16.msra.mxu0 %v302
  %1311 = vmatprep.subr.bf16.mxu0 0
  %1312 = vmatpush1.bf16.msra.mxu0 %v303
  %1313 = vmatprep.subr.bf16.mxu0 0
  %1314 = vmatpush1.bf16.msra.mxu0 0
  %1315 = vmatprep.subr.bf16.mxu0 0
  %1316 = vmatpush1.bf16.msra.mxu0 0
  %1317 = vmatprep.subr.bf16.mxu0 0
  %1318 = vmatpush1.bf16.msra.mxu0 0
  %1319 = vmatprep.subr.bf16.mxu0 0
  %1320 = vmatpush1.bf16.msra.mxu0 0
  %1321 = vmatprep.subr.bf16.mxu0 0
  %1322 = vmatpush1.bf16.msra.mxu0 0
  %1323 = vmatprep.subr.bf16.mxu0 0
  %1324 = vmatpush1.bf16.msra.mxu0 0
  %1325 = vmatprep.subr.bf16.mxu0 0
  %1326 = vmatpush1.bf16.msra.mxu0 0
  %1327 = vmatprep.subr.bf16.mxu0 0
  %1328 = vmatpush1.bf16.msra.mxu0 0
  %1329 = vmatprep.subr.bf16.mxu0 0
  %1330 = vmatpush1.bf16.msra.mxu0 0
  %1331 = vmatprep.subr.bf16.mxu0 0
  %1332 = vmatpush1.bf16.msra.mxu0 0
  %1333 = vmatprep.subr.bf16.mxu0 0
  %1334 = vmatpush1.bf16.msra.mxu0 0
  %1335 = vmatprep.subr.bf16.mxu0 0
  %1336 = vmatpush1.bf16.msra.mxu0 0
  %1337 = vmatprep.subr.bf16.mxu0 0
  %1338 = vmatpush1.bf16.msra.mxu0 0
  %1339 = vmatprep.subr.bf16.mxu0 0
  %1340 = vmatpush1.bf16.msra.mxu0 0
  %1341 = vmatprep.mubr.bf16.mxu0 0
  %1342 = vmatmul.mubr.bf16.gmra.mrb[0].mxu0 %v1307
  %v1343 = vpop.f32.mrb[0].mxu0
  %v1344 = vadd.f32 0.0, %v1343
  %v1345 = vpop.f32.mrb[0].mxu0
  %v1346 = vpop.f32.mrb[0].mxu0
  %v1347 = vpop.f32.mrb[0].mxu0
  %1348 = vdwg.mxu0
  %v1349 = vadd.f32 %v228, %v1344
  %v1350 = vmul.f32 %v1349, %v244
  %v1351 = vtanh.pop %v1350
  %v1352 = vmul.f32 %v1351, %v244
  %v1353 = vadd.f32 %v1352, %v245
  %v1354 = vmul.f32 %v1353, %v1230
  %1356 = vrot.lane.b32.xlu0 %v1353, 64
  %v1357 = vpop.permute.xlu0 %1356
  %v1359 = vmul.f32 %v1353, %v1357
  %1361 = vrot.lane.b32.xlu0 %v1359, 32
  %v1362 = vpop.permute.xlu0 %1361
  %v1364 = vadd.f32 %v1354, %v1362
  %v1365 = vtanh.pop %v1364
  %1367 = vrot.lane.b32.xlu0 %v1365, 64
  %v1368 = vpop.permute.xlu0 %1367
  %v1370 = vmul.f32 %v1353, %v1368
  %v1371 = vsel %vm293, %v1370, %v1229
  %v1372 = vpack.c.bf16 %v1300, %v1300
  %1374 = vrot.lane.b32.xlu0 %v1372, 32
  %v1375 = vpop.permute.xlu0 %1374
  %v1377 = vsel %vm306, %v1375, 0
  %1379 = vmatprep.subr.bf16.mxu0 0
  %1380 = vmatpush1.bf16.msra.mxu0 %v382
  %1381 = vmatprep.subr.bf16.mxu0 0
  %1382 = vmatpush1.bf16.msra.mxu0 %v383
  %1383 = vmatprep.subr.bf16.mxu0 0
  %1384 = vmatpush1.bf16.msra.mxu0 0
  %1385 = vmatprep.subr.bf16.mxu0 0
  %1386 = vmatpush1.bf16.msra.mxu0 0
  %1387 = vmatprep.subr.bf16.mxu0 0
  %1388 = vmatpush1.bf16.msra.mxu0 0
  %1389 = vmatprep.subr.bf16.mxu0 0
  %1390 = vmatpush1.bf16.msra.mxu0 0
  %1391 = vmatprep.subr.bf16.mxu0 0
  %1392 = vmatpush1.bf16.msra.mxu0 0
  %1393 = vmatprep.subr.bf16.mxu0 0
  %1394 = vmatpush1.bf16.msra.mxu0 0
  %1395 = vmatprep.subr.bf16.mxu0 0
  %1396 = vmatpush1.bf16.msra.mxu0 0
  %1397 = vmatprep.subr.bf16.mxu0 0
  %1398 = vmatpush1.bf16.msra.mxu0 0
  %1399 = vmatprep.subr.bf16.mxu0 0
  %1400 = vmatpush1.bf16.msra.mxu0 0
  %1401 = vmatprep.subr.bf16.mxu0 0
  %1402 = vmatpush1.bf16.msra.mxu0 0
  %1403 = vmatprep.subr.bf16.mxu0 0
  %1404 = vmatpush1.bf16.msra.mxu0 0
  %1405 = vmatprep.subr.bf16.mxu0 0
  %1406 = vmatpush1.bf16.msra.mxu0 0
  %1407 = vmatprep.subr.bf16.mxu0 0
  %1408 = vmatpush1.bf16.msra.mxu0 0
  %1409 = vmatprep.subr.bf16.mxu0 0
  %1410 = vmatpush1.bf16.msra.mxu0 0
  %1411 = vmatprep.mubr.bf16.mxu0 0
  %1412 = vmatmul.mubr.bf16.gmra.mrb[0].mxu0 %v1377
  %v1413 = vpop.f32.mrb[0].mxu0
  %v1414 = vadd.f32 0.0, %v1413
  %v1415 = vpop.f32.mrb[0].mxu0
  %v1416 = vpop.f32.mrb[0].mxu0
  %v1417 = vpop.f32.mrb[0].mxu0
  %1418 = vdwg.mxu0
  %v1419 = vadd.f32 %v196, %v1414
  %v1420 = vmul.f32 %v1419, %v244
  %v1421 = vtanh.pop %v1420
  %v1422 = vmul.f32 %v1421, %v244
  %v1423 = vadd.f32 %v1422, %v245
  %v1424 = vmul.f32 %v1423, %v1301
  %1426 = vrot.lane.b32.xlu0 %v1423, 64
  %v1427 = vpop.permute.xlu0 %1426
  %v1429 = vmul.f32 %v1423, %v1427
  %1431 = vrot.lane.b32.xlu0 %v1429, 32
  %v1432 = vpop.permute.xlu0 %1431
  %v1434 = vadd.f32 %v1424, %v1432
  %v1435 = vtanh.pop %v1434
  %1437 = vrot.lane.b32.xlu0 %v1435, 64
  %v1438 = vpop.permute.xlu0 %1437
  %v1440 = vmul.f32 %v1423, %v1438
  %v1441 = vsel %vm251, %v1440, %v1300
  %1443 = vrot.lane.b32.xlu0 %v1371, 32
  %v1444 = vpop.permute.xlu0 %1443
  %1447 = vrot.lane.b32.xlu0 %v1441, 64
  %v1448 = vpop.permute.xlu0 %1447
  %v1450 = vsel %vm306, %v1444, %v1448
  %1451 = vst.msk [vmem:[%s6] sm:$0xff] %vm146, %v1450
  // Predicated region
  $region26: #{forward.1} parent=0 // pred_check
    _
  $region27: #{forward.1} parent=0 // pred_check_branch
    %1453 = sbr.rel (0) target = $region29
  $region28: #{forward.1} parent=0 // pred_region
    _
  $region29: #{forward.1} parent=0 // pred_fallthru
    _
  // Predicated region
  $region30: #{forward.1} parent=0 // pred_check
    _
  $region31: #{forward.1} parent=0 // pred_check_branch
    %1455 = sbr.rel (0) target = $region33
  $region32: #{forward.1} parent=0 // pred_region
    _
  $region33: #{forward.1} parent=0 // pred_fallthru
    _

</llo_original>
